<compile_context>
chip_gen: v7x
topology: tpu7x:2x2x1
jax: 0.10.0
libtpu: 0.0.40
codegen_flags: <defaults>
</compile_context>

<pallas_src>
import jax
import jax.numpy as jnp
from jax import lax
from jax.experimental import pallas as pl
from jax.experimental.pallas import tpu as pltpu


def _noisy_linear_kernel(prm_ref,                    # SMEM scalar prefetch: [mean, std]
                         x_ref, w_ref, b_ref, eps_ref,  # VMEM input tiles
                         o_ref,                      # VMEM output tile
                         acc_ref):                   # f32 VMEM accumulator
    k = pl.program_id(2)
    nk = pl.num_programs(2)

    # k == 0: init accumulator with bias + mean + std*eps for this (m, n)
    # tile.  Folding the noise here keeps the last-k epilogue store-only and
    # hides the VPU work under the MXU / DMA of the k loop.
    @pl.when(k == 0)
    def _():
        mean = prm_ref[0]
        std = prm_ref[1]
        acc_ref[...] = (b_ref[...].astype(jnp.float32) + mean
                        + std * eps_ref[...].astype(jnp.float32))

    x_t = x_ref[...]                                 # [tm, tk]
    w_t = w_ref[...]                                 # [tk, tn] = (W.T + I) tile
    if x_t.dtype != w_t.dtype:                       # bf16 matmul operands, f32 acc
        x_t = x_t.astype(w_t.dtype)

    acc_ref[...] += lax.dot_general(
        x_t, w_t, (((1,), (0,)), ((), ())),
        preferred_element_type=jnp.float32)

    # Last k step: cast and store the finished tile.
    @pl.when(k == nk - 1)
    def _():
        o_ref[...] = acc_ref[...].astype(o_ref.dtype)


def noisy_linear(x, w, b, *, mean=0.0, std=0.05, key=None, seed=0,
                 block_m=256, block_n=256, block_k=None,
                 cast_bf16=True, vmem_limit_bytes=None):
    """x: [B, F], w: [F, F] in PyTorch [out, in] layout, b: [F]."""
    B, Fin = x.shape
    Fout, Fin2 = w.shape
    assert Fin == Fin2, "weight in_features mismatch"
    assert Fin == Fout, "NoisyLinear forward (inp + noise) requires in == out features"
    assert b.shape == (Fout,)

    # One-time wrapper-side transforms (amortized across calls):
    #   residual fold:  x + x @ W.T == x @ (W.T + I)
    #   pre-transpose:  native [tk, tn] RHS tiles feed the MXU directly.
    w_eff = w.T.astype(jnp.float32) + jnp.eye(Fin, dtype=jnp.float32)
    if cast_bf16:
        # bf16 weights in HBM: halves W DMA traffic & VMEM footprint.
        w_eff = w_eff.astype(jnp.bfloat16)

    tm = min(block_m, B)
    tn = min(block_n, Fout)
    if block_k is None:
        tk = Fin if Fin <= 2048 else 2048            # full-K for moderate Fin
    else:
        tk = min(block_k, Fin)
    assert B % tm == 0 and Fout % tn == 0 and Fin % tk == 0, (
        f"B={B}, F={Fout}/{Fin} must be multiples of tm={tm}, tn={tn}, tk={tk}")

    b2 = b.reshape(1, Fout).astype(jnp.float32)      # 2D for VMEM tiling
    prm = jnp.asarray([mean, std], jnp.float32)

    if std != 0.0:
        if key is None:
            key = jax.random.PRNGKey(seed)
        eps = jax.random.normal(key, (B, Fout), jnp.float32)
    else:
        eps = jnp.zeros((B, Fout), jnp.float32)      # eval fast path: no randn

    grid = (B // tm, Fout // tn, Fin // tk)          # reduction axis (k) last
    grid_spec = pltpu.PrefetchScalarGridSpec(
        num_scalar_prefetch=1,
        grid=grid,
        in_specs=[
            pl.BlockSpec((tm, tk), lambda m, n, k, prm: (m, k)),   # x
            pl.BlockSpec((tk, tn), lambda m, n, k, prm: (k, n)),   # W.T + I
            pl.BlockSpec((1, tn), lambda m, n, k, prm: (0, n)),    # bias
            pl.BlockSpec((tm, tn), lambda m, n, k, prm: (m, n)),   # eps (resident over k)
        ],
        out_specs=pl.BlockSpec((tm, tn), lambda m, n, k, prm: (m, n)),
        scratch_shapes=[pltpu.VMEM((tm, tn), jnp.float32)],
    )

    itemsize = jnp.dtype(x.dtype).itemsize
    cost = pl.CostEstimate(
        flops=2 * B * Fin * Fout,
        transcendentals=0,
        bytes_accessed=(B * Fin * itemsize
                        + Fin * Fout * jnp.dtype(w_eff.dtype).itemsize
                        + Fout * 4 + B * Fout * 4
                        + B * Fout * itemsize))

    return pl.pallas_call(
        _noisy_linear_kernel,
        out_shape=jax.ShapeDtypeStruct((B, Fout), x.dtype),
        grid_spec=grid_spec,
        compiler_params=pltpu.CompilerParams(
            dimension_semantics=("parallel", "parallel", "arbitrary"),
            vmem_limit_bytes=vmem_limit_bytes),
        cost_estimate=cost,
    )(prm, x, w_eff, b2, eps)


if __name__ == "__main__":
    B, F = 256, 512            # lane-dense; exercises a (1, 2, 1) / (2, 2, 1) grid
    mean, std = 0.25, 0.05

    root = jax.random.PRNGKey(0)
    kx, kw, kb, keps = jax.random.split(root, 4)

    # Deterministic "nn.Linear"-style init (uniform in +/- 1/sqrt(in_features)).
    bound = 1.0 / jnp.sqrt(jnp.float32(F))
    w = jax.random.uniform(kw, (F, F), jnp.float32, -bound, bound)   # [out, in]
    b = jax.random.uniform(kb, (F,), jnp.float32, -bound, bound)
    x = jax.random.normal(kx, (B, F), jnp.float32)

    det_ref = x + x @ w.T + b          # deterministic part of the forward

    # 1) Exact path: std = 0, f32 weights -> must match the reference.
    out0 = jax.block_until_ready(
        noisy_linear(x, w, b, mean=mean, std=0.0, cast_bf16=False))
    assert out0.shape == (B, F)
    assert jnp.allclose(out0, det_ref + mean, atol=2e-2, rtol=2e-2), \
        "deterministic path mismatch vs reference"

    # 2) Noisy path (bf16 weights).  eps is reproducible from the key, so the
    #    full output can be checked (loose tol for bf16 matmul rounding) plus
    #    the injected-noise statistics.
    eps = jax.random.normal(keps, (B, F), jnp.float32)
    out = jax.block_until_ready(
        noisy_linear(x, w, b, mean=mean, std=std, key=keps, cast_bf16=True))
    ref = det_ref + mean + std * eps
    assert jnp.max(jnp.abs(out - ref)) < 8e-2, "noisy path mismatch vs reference"
    resid = (out - det_ref).astype(jnp.float32)
    assert jnp.abs(jnp.mean(resid) - mean) < 5e-3, "noise mean off"
    assert jnp.abs(jnp.std(resid) - std) < 6e-3, "noise std off"

    print("KERNEL_OK")
</pallas_src>

<mosaic_0001>
module attributes {stable_mosaic.version = 11 : i64} {
  func.func @_noisy_linear_kernel(%arg0: i32, %arg1: i32, %arg2: i32, %arg3: memref<2xf32, #tpu.memory_space<smem>>, %arg4: memref<256x512xf32, #tpu.memory_space<vmem>>, %arg5: memref<512x256xf32, #tpu.memory_space<vmem>>, %arg6: memref<1x256xf32, #tpu.memory_space<vmem>>, %arg7: memref<256x256xf32, #tpu.memory_space<vmem>>, %arg8: memref<256x256xf32, #tpu.memory_space<vmem>>, %arg9: memref<256x256xf32, #tpu.memory_space<vmem>>) attributes {dimension_semantics = [#tpu.dimension_semantics<parallel>, #tpu.dimension_semantics<parallel>, #tpu.dimension_semantics<arbitrary>], iteration_bounds = array<i64: 1, 2, 1>, scalar_prefetch = 1 : i64, scratch_operands = 1 : i64, tpu.core_type = #tpu.core_type<tc>, window_params = [{transform_indices = @transform_0, window_bounds = array<i64: 256, 512>}, {transform_indices = @transform_1, window_bounds = array<i64: 512, 256>}, {transform_indices = @transform_2, window_bounds = array<i64: 1, 256>}, {transform_indices = @transform_3, window_bounds = array<i64: 256, 256>}, {transform_indices = @transform_4, window_bounds = array<i64: 256, 256>}]} {
    %c0_i32 = arith.constant 0 : i32
    %0 = arith.cmpi eq, %arg2, %c0_i32 : i32
    %1 = arith.extui %0 : i1 to i32
    %c0_i32_0 = arith.constant 0 : i32
    %2 = arith.cmpi ne, %1, %c0_i32_0 : i32
    scf.if %2 {
      %c0_10 = arith.constant 0 : index
      %12 = memref.load %arg3[%c0_10] : memref<2xf32, #tpu.memory_space<smem>>
      %c1 = arith.constant 1 : index
      %13 = memref.load %arg3[%c1] : memref<2xf32, #tpu.memory_space<smem>>
      %c0_11 = arith.constant 0 : index
      %c0_12 = arith.constant 0 : index
      %14 = vector.load %arg6[%c0_11, %c0_12] : memref<1x256xf32, #tpu.memory_space<vmem>>, vector<1x256xf32>
      %15 = vector.broadcast %12 : f32 to vector<1x256xf32>
      %16 = arith.addf %14, %15 : vector<1x256xf32>
      %c0_13 = arith.constant 0 : index
      %c0_14 = arith.constant 0 : index
      %17 = vector.load %arg7[%c0_13, %c0_14] : memref<256x256xf32, #tpu.memory_space<vmem>>, vector<256x256xf32>
      %18 = vector.broadcast %13 : f32 to vector<256x256xf32>
      %19 = arith.mulf %18, %17 : vector<256x256xf32>
      %20 = vector.broadcast %16 : vector<1x256xf32> to vector<256x256xf32>
      %21 = arith.addf %20, %19 : vector<256x256xf32>
      %c0_15 = arith.constant 0 : index
      %c0_16 = arith.constant 0 : index
      %22 = vector.load %arg9[%c0_15, %c0_16] : memref<256x256xf32, #tpu.memory_space<vmem>>, vector<256x256xf32>
      tpu.vector_store %arg9[%c0_15, %c0_16], %21 {strides = array<i32>} : memref<256x256xf32, #tpu.memory_space<vmem>>, vector<256x256xf32>,
    } else {
    }
    %c0 = arith.constant 0 : index
    %c0_1 = arith.constant 0 : index
    %3 = vector.load %arg4[%c0, %c0_1] : memref<256x512xf32, #tpu.memory_space<vmem>>, vector<256x512xf32>
    %c0_2 = arith.constant 0 : index
    %c0_3 = arith.constant 0 : index
    %4 = vector.load %arg5[%c0_2, %c0_3] : memref<512x256xf32, #tpu.memory_space<vmem>>, vector<512x256xf32>
    %c0_4 = arith.constant 0 : index
    %c0_5 = arith.constant 0 : index
    %5 = vector.load %arg9[%c0_4, %c0_5] : memref<256x256xf32, #tpu.memory_space<vmem>>, vector<256x256xf32>
    %cst = arith.constant dense<0.000000e+00> : vector<256x256xf32>
    %6 = tpu.matmul %3, %4, %cst {dimension_numbers = #tpu.dot_dimension_numbers<[1], [0], [0], [1], [0, 0, 1, 1], [], []>} : vector<256x512xf32>, vector<512x256xf32>, vector<256x256xf32> -> vector<256x256xf32>
    %7 = arith.addf %5, %6 : vector<256x256xf32>
    %c0_6 = arith.constant 0 : index
    %c0_7 = arith.constant 0 : index
    %8 = vector.load %arg9[%c0_6, %c0_7] : memref<256x256xf32, #tpu.memory_space<vmem>>, vector<256x256xf32>
    tpu.vector_store %arg9[%c0_6, %c0_7], %7 {strides = array<i32>} : memref<256x256xf32, #tpu.memory_space<vmem>>, vector<256x256xf32>,
    %c0_i32_8 = arith.constant 0 : i32
    %9 = arith.cmpi eq, %arg2, %c0_i32_8 : i32
    %10 = arith.extui %9 : i1 to i32
    %c0_i32_9 = arith.constant 0 : i32
    %11 = arith.cmpi ne, %10, %c0_i32_9 : i32
    scf.if %11 {
      %c0_10 = arith.constant 0 : index
      %c0_11 = arith.constant 0 : index
      %12 = vector.load %arg9[%c0_10, %c0_11] : memref<256x256xf32, #tpu.memory_space<vmem>>, vector<256x256xf32>
      %c0_12 = arith.constant 0 : index
      %c0_13 = arith.constant 0 : index
      %13 = vector.load %arg8[%c0_12, %c0_13] : memref<256x256xf32, #tpu.memory_space<vmem>>, vector<256x256xf32>
      tpu.vector_store %arg8[%c0_12, %c0_13], %12 {strides = array<i32>} : memref<256x256xf32, #tpu.memory_space<vmem>>, vector<256x256xf32>,
    } else {
    }
    return
  }
  func.func @transform_0(%arg0: i32, %arg1: i32, %arg2: i32, %arg3: memref<2xf32, #tpu.memory_space<smem>>) -> (i32, i32) {
    %c0_i32 = arith.constant 0 : i32
    return %arg0, %arg2 : i32, i32
  }
  func.func @transform_1(%arg0: i32, %arg1: i32, %arg2: i32, %arg3: memref<2xf32, #tpu.memory_space<smem>>) -> (i32, i32) {
    %c0_i32 = arith.constant 0 : i32
    return %arg2, %arg1 : i32, i32
  }
  func.func @transform_2(%arg0: i32, %arg1: i32, %arg2: i32, %arg3: memref<2xf32, #tpu.memory_space<smem>>) -> (i32, i32) {
    %c0_i32 = arith.constant 0 : i32
    %c0_i32_0 = arith.constant 0 : i32
    return %c0_i32, %arg1 : i32, i32
  }
  func.func @transform_3(%arg0: i32, %arg1: i32, %arg2: i32, %arg3: memref<2xf32, #tpu.memory_space<smem>>) -> (i32, i32) {
    %c0_i32 = arith.constant 0 : i32
    return %arg0, %arg1 : i32, i32
  }
  func.func @transform_4(%arg0: i32, %arg1: i32, %arg2: i32, %arg3: memref<2xf32, #tpu.memory_space<smem>>) -> (i32, i32) {
    %c0_i32 = arith.constant 0 : i32
    return %arg0, %arg1 : i32, i32
  }
}

</mosaic_0001>

<llo_original>
// kernel: tpu_custom_call.1
$region0: #{tpu_custom_call.1}
  #allocation0 [shape = 'u32[]', space=smem, size = 0x4, offset = 0x4, fixed_abs, tag = 'smem constant byte address 0x4 - core index']
  #allocation1 [shape = 'u32[144,128]{1,0:T(1,128)}', space=vmem, size = 0x12000, scoped, tag = 'internal scratch']
  #allocation2 [shape = 'f32[256,256]{1,0:T(8,128)}', space=vmem, size = 0x40000, scoped, tag = 'scratch operand']
  #allocation3 [shape = 's32[1]{0}', space=sflag, size = 0x4, scoped, tag = 'scoped memory for tpu_custom_call.1']
  #allocation4 [shape = 'u8[512]{0}', space=smem, size = 0x200, scoped, tag = 'prefetched SMEM operand 0']
  %s0 = inlined_call_operand.hbm [shape: f32[2], index: 0, kind: input, shape index: {}]
  %s1 = inlined_call_operand.hbm [shape: f32[256,512], index: 1, kind: input, shape index: {}]
  %s2 = inlined_call_operand.hbm [shape: f32[512,512], index: 2, kind: input, shape index: {}]
  %s3 = inlined_call_operand.vmem [shape: f32[1,512], index: 3, kind: input, shape index: {}]
  %s4 = inlined_call_operand.hbm [shape: f32[256,512], index: 4, kind: input, shape index: {}]
  %s5 = inlined_call_operand.hbm [shape: f32[256,512], index: 5, kind: output, shape index: {}]
  %s6 = sld [smem:[#allocation0]]
  $region69: #{tpu_custom_call.1} parent=0
    _
  %s8 = ssub.s32 1, %s6
  %s9 = scalar_select 0, %s8, %s6
  %11 = dma.hbm_to_smem %s0, 16, [#allocation4], [#allocation3]
  %12 = dma.done [#allocation3], 16
  %13 = sfence
  $region1: #{tpu_custom_call.1} parent=0
    #allocation5 [shape = 'u8[524288]{0}', space=vmem, size = 0x80000, scoped, tag = 'input window, operand 1, single buffered']
    #allocation6 [shape = 's32[2]{0}', space=sflag, size = 0x8, scoped, tag = 'scoped memory for tpu_custom_call.1']
    #allocation7 [shape = 's32[2]{0}', space=sflag, size = 0x8, scoped, tag = 'scoped memory for tpu_custom_call.1']
    #allocation8 [shape = 'u8[1048576]{0}', space=vmem, size = 0x100000, scoped, tag = 'input window, operand 2']
    #allocation9 [shape = 's32[2]{0}', space=sflag, size = 0x8, scoped, tag = 'scoped memory for tpu_custom_call.1']
    #allocation10 [shape = 'u8[524288]{0}', space=vmem, size = 0x80000, scoped, tag = 'input window, operand 4']
    #allocation11 [shape = 'u8[524288]{0}', space=vmem, size = 0x80000, scoped, tag = 'output window, operand 0']
    %14 = vsyncpa [#allocation6], 0
    %15 = vsyncpa [#allocation9], 0
    %s16 = scalar_lea.sflag [#allocation9], 1
    %17 = vsyncpa %s16, 0
    %18 = vsyncpa [#allocation7], 0
    %s19 = scalar_lea.sflag [#allocation7], 1
    %20 = vsyncpa %s19, 0
    loop: start=0, step=1, limit=4
    $region2: #{tpu_custom_call.1} parent=1 // loop_pre_header
      _
    $region3: #{tpu_custom_call.1} parent=1 // loop_header
      %s22 = sphi 0, %s26
      %p23 = scmp.ge.s32.totalorder %s22, 4
      %s29 = sphi 0, %s48
      %s30 = sphi 0, %s44
      %s31 = sphi 0, %s40
      %s32 = sphi 0, %s29
      %s33 = sphi 0, %s30
      %s34 = sphi 0, %s31
      %s35 = sphi 0, %s32
      %s36 = sphi 0, %s33
      %s37 = sphi 0, %s34
      %s53 = sphi 0, %s55
      %s56 = sphi 0, %s53
      %s57 = sphi 0, %s56
      %s73 = sphi 0, %s57
      %s81 = sphi 0, %s83
      %s84 = sphi 0, %s81
      %s85 = sphi 0, %s84
      %s101 = sphi 0, %s85
      %s107 = sphi 0, %s109
      %s110 = sphi 0, %s107
      %s111 = sphi 0, %s110
      %s127 = sphi 0, %s111
      %s135 = sphi 0, %s137
      %s138 = sphi 0, %s135
      %s139 = sphi 0, %s138
      %s155 = sphi 0, %s139
      %s163 = sphi 0, %s165
      %s166 = sphi 0, %s163
      %s167 = sphi 0, %s166
      %s183 = sphi 0, %s167
    $region4: #{tpu_custom_call.1} parent=1 // loop_header_branch
      %25 = sbr.rel (%p23) target = $region8
    $region5: #{tpu_custom_call.1} parent=1 // loop_body
      %s27 = ssub.s32 %s22, 1
      %s28 = ssub.s32 %s22, 2
      %s38 = sadd.s32 1, %s31
      %p39 = scmp.ge.s32.totalorder %s38, 1
      %s40 = scalar_select %p39, 0, %s38
      %s41 = sadd.s32 1, %s30
      %s42 = scalar_select %p39, %s41, %s30
      %p43 = scmp.ge.s32.totalorder %s42, 2
      %s44 = scalar_select %p43, 0, %s42
      %s45 = sadd.s32 1, %s29
      %s46 = scalar_select %p43, %s45, %s29
      %p47 = scmp.ge.s32.totalorder %s46, 1
      %s48 = scalar_select %p47, 0, %s46
      %s49 = ssub.s32 %s29, %s48
      %s50 = ssub.s32 %s31, %s40
      %s51 = sor.u32 %s49, %s50
      %p52 = scmp.eq.s32.totalorder %s51, 0
      %s54 = sadd.s32 %s53, 1
      %s55 = scalar_select %p52, %s53, %s54
      %p58 = pneg %p52
      %p59 = scmp.eq.s32.totalorder %s22, 1
      %p60 = por %p58, %p59
      %p61 = scmp.ne.s32.totalorder %s53, %s56
      %p62 = scmp.eq.s32.totalorder %s22, 0
      %p63 = por %p61, %p62
      %p64 = scmp.ne.s32.totalorder %s53, %s56
      %p65 = scmp.eq.s32.totalorder %s27, 1
      %p66 = por %p64, %p65
      %p67 = scmp.ne.s32.totalorder %s56, %s57
      %p68 = scmp.eq.s32.totalorder %s27, 0
      %p69 = por %p67, %p68
      %p70 = scmp.ne.s32.totalorder %s56, %s57
      %p71 = scmp.eq.s32.totalorder %s28, 1
      %p72 = por %p70, %p71
      %p74 = scmp.ne.s32.totalorder %s57, %s73
      %p75 = scmp.eq.s32.totalorder %s28, 0
      %p76 = por %p74, %p75
      %s77 = ssub.s32 %s31, %s40
      %s78 = ssub.s32 %s30, %s44
      %s79 = sor.u32 %s77, %s78
      %p80 = scmp.eq.s32.totalorder %s79, 0
      %s82 = sadd.s32 %s81, 1
      %s83 = scalar_select %p80, %s81, %s82
      %p86 = pneg %p80
      %p87 = scmp.eq.s32.totalorder %s22, 1
      %p88 = por %p86, %p87
      %p89 = scmp.ne.s32.totalorder %s81, %s84
      %p90 = scmp.eq.s32.totalorder %s22, 0
      %p91 = por %p89, %p90
      %p92 = scmp.ne.s32.totalorder %s81, %s84
      %p93 = scmp.eq.s32.totalorder %s27, 1
      %p94 = por %p92, %p93
      %p95 = scmp.ne.s32.totalorder %s84, %s85
      %p96 = scmp.eq.s32.totalorder %s27, 0
      %p97 = por %p95, %p96
      %p98 = scmp.ne.s32.totalorder %s84, %s85
      %p99 = scmp.eq.s32.totalorder %s28, 1
      %p100 = por %p98, %p99
      %p102 = scmp.ne.s32.totalorder %s85, %s101
      %p103 = scmp.eq.s32.totalorder %s28, 0
      %p104 = por %p102, %p103
      %s105 = ssub.s32 %s30, %s44
      %p106 = scmp.eq.s32.totalorder %s105, 0
      %s108 = sadd.s32 %s107, 1
      %s109 = scalar_select %p106, %s107, %s108
      %p112 = pneg %p106
      %p113 = scmp.eq.s32.totalorder %s22, 1
      %p114 = por %p112, %p113
      %p115 = scmp.ne.s32.totalorder %s107, %s110
      %p116 = scmp.eq.s32.totalorder %s22, 0
      %p117 = por %p115, %p116
      %p118 = scmp.ne.s32.totalorder %s107, %s110
      %p119 = scmp.eq.s32.totalorder %s27, 1
      %p120 = por %p118, %p119
      %p121 = scmp.ne.s32.totalorder %s110, %s111
      %p122 = scmp.eq.s32.totalorder %s27, 0
      %p123 = por %p121, %p122
      %p124 = scmp.ne.s32.totalorder %s110, %s111
      %p125 = scmp.eq.s32.totalorder %s28, 1
      %p126 = por %p124, %p125
      %p128 = scmp.ne.s32.totalorder %s111, %s127
      %p129 = scmp.eq.s32.totalorder %s28, 0
      %p130 = por %p128, %p129
      %s131 = ssub.s32 %s29, %s48
      %s132 = ssub.s32 %s30, %s44
      %s133 = sor.u32 %s131, %s132
      %p134 = scmp.eq.s32.totalorder %s133, 0
      %s136 = sadd.s32 %s135, 1
      %s137 = scalar_select %p134, %s135, %s136
      %p140 = pneg %p134
      %p141 = scmp.eq.s32.totalorder %s22, 1
      %p142 = por %p140, %p141
      %p143 = scmp.ne.s32.totalorder %s135, %s138
      %p144 = scmp.eq.s32.totalorder %s22, 0
      %p145 = por %p143, %p144
      %p146 = scmp.ne.s32.totalorder %s135, %s138
      %p147 = scmp.eq.s32.totalorder %s27, 1
      %p148 = por %p146, %p147
      %p149 = scmp.ne.s32.totalorder %s138, %s139
      %p150 = scmp.eq.s32.totalorder %s27, 0
      %p151 = por %p149, %p150
      %p152 = scmp.ne.s32.totalorder %s138, %s139
      %p153 = scmp.eq.s32.totalorder %s28, 1
      %p154 = por %p152, %p153
      %p156 = scmp.ne.s32.totalorder %s139, %s155
      %p157 = scmp.eq.s32.totalorder %s28, 0
      %p158 = por %p156, %p157
      %s159 = ssub.s32 %s29, %s48
      %s160 = ssub.s32 %s30, %s44
      %s161 = sor.u32 %s159, %s160
      %p162 = scmp.eq.s32.totalorder %s161, 0
      %s164 = sadd.s32 %s163, 1
      %s165 = scalar_select %p162, %s163, %s164
      %p168 = pneg %p162
      %p169 = scmp.eq.s32.totalorder %s22, 1
      %p170 = por %p168, %p169
      %p171 = scmp.ne.s32.totalorder %s163, %s166
      %p172 = scmp.eq.s32.totalorder %s22, 0
      %p173 = por %p171, %p172
      %p174 = scmp.ne.s32.totalorder %s163, %s166
      %p175 = scmp.eq.s32.totalorder %s27, 1
      %p176 = por %p174, %p175
      %p177 = scmp.ne.s32.totalorder %s166, %s167
      %p178 = scmp.eq.s32.totalorder %s27, 0
      %p179 = por %p177, %p178
      %p180 = scmp.ne.s32.totalorder %s166, %s167
      %p181 = scmp.eq.s32.totalorder %s28, 1
      %p182 = por %p180, %p181
      %p184 = scmp.ne.s32.totalorder %s167, %s183
      %p185 = scmp.eq.s32.totalorder %s28, 0
      %p186 = por %p184, %p185
      %p187 = scmp.le.s32.totalorder 1, %s22
      %p188 = scmp.lt.s32.totalorder %s22, 3
      %p189 = pnand %p187, %p188
      %p190 = pneg %p189
      // Predicated region
      $region9: #{tpu_custom_call.1} parent=5 // pred_check
        _
      $region10: #{tpu_custom_call.1} parent=5 // pred_check_branch
        %192 = sbr.rel (%p189) target = $region12
      $region11: #{tpu_custom_call.1} parent=5 // pred_region
        %s193 = ssub.s32 %s22, 1
        // Predicated region
        $region13: #{tpu_custom_call.1} parent=11 // pred_check
          %p194 = pneg %p69
        $region14: #{tpu_custom_call.1} parent=11 // pred_check_branch
          %196 = sbr.rel (%p194) target = $region16
        $region15: #{tpu_custom_call.1} parent=11 // pred_region
          %s197 = smul.u32 32, %s32
          %s198 = smul.u32 4, %s34
          %s200 = ssub.s32 16384, 16384
          %201 = vsyncadd [#allocation6], %s200
          %s202 = smul.addr %s197, 4
          %s203 = sadd.s32 %s198, %s202
          %s204 = smul.addr %s203, 128
          %s205 = scalar_lea.hbm %s1, %s204
          %s206 = sshll.u32 [#allocation5], 4
          %s207 = int_to_ptr.vmem [resolvable:$true] %s206
          %212 = dma.hbm_to_vmem [thread:$0]  %s205, 16384, %s207, [#allocation6], 512, 512, 32
        $region16: #{tpu_custom_call.1} parent=11 // pred_fallthru
          _
      $region12: #{tpu_custom_call.1} parent=5 // pred_fallthru
        _
      %p213 = scmp.lt.s32.totalorder %s22, 2
      // Predicated region
      $region17: #{tpu_custom_call.1} parent=5 // pred_check
        %p214 = pneg %p213
      $region18: #{tpu_custom_call.1} parent=5 // pred_check_branch
        %216 = sbr.rel (%p214) target = $region20
      $region19: #{tpu_custom_call.1} parent=5 // pred_region
        // Predicated region
        $region21: #{tpu_custom_call.1} parent=19 // pred_check
          %p217 = pneg %p91
        $region22: #{tpu_custom_call.1} parent=19 // pred_check_branch
          %219 = sbr.rel (%p217) target = $region24
        $region23: #{tpu_custom_call.1} parent=19 // pred_region
          %s220 = sand.u32 %s22, 1
          %s221 = scalar_lea.sflag [#allocation9], %s220
          %s222 = sand.u32 %s81, 1
          %s223 = smul.addr %s222, 1024
          %s224 = scalar_lea.vmem [#allocation8], %s223
          %s225 = smul.u32 64, %s31
          %s226 = smul.u32 2, %s30
          %s228 = ssub.s32 16384, 16384
          %229 = vsyncadd %s221, %s228
          %s230 = smul.addr %s225, 4
          %s231 = sadd.s32 %s226, %s230
          %s232 = smul.addr %s231, 128
          %s233 = scalar_lea.hbm %s2, %s232
          %s234 = sshll.u32 %s224, 4
          %s235 = int_to_ptr.vmem [resolvable:$true] %s234
          %240 = dma.hbm_to_vmem [thread:$0]  %s233, 16384, %s235, %s221, 512, 256, 16
        $region24: #{tpu_custom_call.1} parent=19 // pred_fallthru
          _
        // Predicated region
        $region25: #{tpu_custom_call.1} parent=19 // pred_check
          %p241 = pneg %p117
        $region26: #{tpu_custom_call.1} parent=19 // pred_check_branch
          %243 = sbr.rel (%p241) target = $region28
        $region27: #{tpu_custom_call.1} parent=19 // pred_region
          %s244 = smul.u32 2, %s30
          %p245 = scmp.lt.s32.totalorder %s244, 3
          %s246 = scalar_select %p245, %s244, 3
          %s247 = scalar_lea.vmem %s3, %s246
          %s248 = smul.u32 2, %s30
        $region28: #{tpu_custom_call.1} parent=19 // pred_fallthru
          _
        // Predicated region
        $region29: #{tpu_custom_call.1} parent=19 // pred_check
          %p249 = pneg %p145
        $region30: #{tpu_custom_call.1} parent=19 // pred_check_branch
          %251 = sbr.rel (%p249) target = $region32
        $region31: #{tpu_custom_call.1} parent=19 // pred_region
          %s252 = sand.u32 %s22, 1
          %s253 = scalar_lea.sflag [#allocation9], %s252
          %s254 = sand.u32 %s135, 1
          %s255 = smul.addr %s254, 512
          %s256 = scalar_lea.vmem [#allocation10], %s255
          %s257 = smul.u32 32, %s29
          %s258 = smul.u32 2, %s30
          %s260 = ssub.s32 8192, 8192
          %261 = vsyncadd %s253, %s260
          %s262 = smul.addr %s257, 4
          %s263 = sadd.s32 %s258, %s262
          %s264 = smul.addr %s263, 128
          %s265 = scalar_lea.hbm %s4, %s264
          %s266 = sshll.u32 %s256, 4
          %s267 = int_to_ptr.vmem [resolvable:$true] %s266
          %272 = dma.hbm_to_vmem [thread:$0]  %s265, 8192, %s267, %s253, 512, 256, 16
        $region32: #{tpu_custom_call.1} parent=19 // pred_fallthru
          _
      $region20: #{tpu_custom_call.1} parent=5 // pred_fallthru
        _
      %p273 = scmp.le.s32.totalorder 1, %s22
      %p274 = scmp.lt.s32.totalorder %s22, 3
      %p275 = pnand %p273, %p274
      %p276 = pneg %p275
      // Predicated region
      $region33: #{tpu_custom_call.1} parent=5 // pred_check
        _
      $region34: #{tpu_custom_call.1} parent=5 // pred_check_branch
        %278 = sbr.rel (%p275) target = $region36
      $region35: #{tpu_custom_call.1} parent=5 // pred_region
        %s279 = ssub.s32 %s22, 1
        // Predicated region
        $region37: #{tpu_custom_call.1} parent=35 // pred_check
          %p280 = pneg %p69
        $region38: #{tpu_custom_call.1} parent=35 // pred_check_branch
          %282 = sbr.rel (%p280) target = $region40
        $region39: #{tpu_custom_call.1} parent=35 // pred_region
          %283 = dma.done [#allocation6], 16384
        $region40: #{tpu_custom_call.1} parent=35 // pred_fallthru
          _
        %s284 = sand.u32 %s27, 1
        %s285 = scalar_lea.sflag [#allocation9], %s284
        %s286 = sand.u32 %s84, 1
        %s287 = smul.addr %s286, 1024
        %s288 = scalar_lea.vmem [#allocation8], %s287
        // Predicated region
        $region41: #{tpu_custom_call.1} parent=35 // pred_check
          %p289 = pneg %p97
        $region42: #{tpu_custom_call.1} parent=35 // pred_check_branch
          %291 = sbr.rel (%p289) target = $region44
        $region43: #{tpu_custom_call.1} parent=35 // pred_region
          %292 = dma.done %s285, 16384
        $region44: #{tpu_custom_call.1} parent=35 // pred_fallthru
          _
        %s293 = sand.u32 %s27, 1
        %s294 = scalar_lea.sflag [#allocation9], %s293
        %s295 = sand.u32 %s138, 1
        %s296 = smul.addr %s295, 512
        %s297 = scalar_lea.vmem [#allocation10], %s296
        // Predicated region
        $region45: #{tpu_custom_call.1} parent=35 // pred_check
          %p298 = pneg %p151
        $region46: #{tpu_custom_call.1} parent=35 // pred_check_branch
          %300 = sbr.rel (%p298) target = $region48
        $region47: #{tpu_custom_call.1} parent=35 // pred_region
          %301 = dma.done %s294, 8192
        $region48: #{tpu_custom_call.1} parent=35 // pred_fallthru
          _
        %p302 = pneg %p69
        %p303 = pneg %p66
        %s304 = sand.u32 %s27, 1
        %s305 = scalar_lea.sflag [#allocation9], %s304
        %s306 = sand.u32 %s84, 1
        %s307 = smul.addr %s306, 1024
        %s308 = scalar_lea.vmem [#allocation8], %s307
        %p309 = pneg %p97
        %p310 = pneg %p94
        %s311 = smul.u32 2, %s33
        %p312 = scmp.lt.s32.totalorder %s311, 3
        %s313 = scalar_select %p312, %s311, 3
        %s314 = scalar_lea.vmem %s3, %s313
        %p315 = pneg %p123
        %p316 = pneg %p120
        %s317 = sand.u32 %s27, 1
        %s318 = scalar_lea.sflag [#allocation9], %s317
        %s319 = sand.u32 %s138, 1
        %s320 = smul.addr %s319, 512
        %s321 = scalar_lea.vmem [#allocation10], %s320
        %p322 = pneg %p151
        %p323 = pneg %p148
        %p324 = pneg %p179
        %p325 = pneg %p176
        %s326 = sand.u32 %s166, 1
        %s327 = scalar_lea.sflag [#allocation7], %s326
        %s328 = sand.u32 %s166, 1
        %s329 = smul.addr %s328, 512
        %s330 = scalar_lea.vmem [#allocation11], %s329
        %s331 = smul.u32 32, %s32
        %s332 = smul.u32 4, %s34
        %s333 = smul.u32 64, %s34
        %s334 = smul.u32 2, %s33
        %s335 = smul.u32 2, %s33
        %p336 = scmp.lt.s32.totalorder %s335, 3
        %s337 = scalar_select %p336, %s335, 3
        %s338 = scalar_lea.vmem %s3, %s337
        %s339 = smul.u32 2, %s33
        %s340 = smul.u32 32, %s32
        %s341 = smul.u32 2, %s33
        %s342 = smul.u32 32, %s32
        %s343 = smul.u32 2, %s33
        %p344 = scmp.eq.s32.totalorder %s34, 0
        // Predicated region
        $region49: #{tpu_custom_call.1} parent=35 // pred_check
          %p345 = pneg %p344
        $region50: #{tpu_custom_call.1} parent=35 // pred_check_branch
          %347 = sbr.rel (%p345) target = $region52
        $region51: #{tpu_custom_call.1} parent=35 // pred_region
          %s348 = sld [smem:[#allocation4]]
          %s349 = sld [smem:[#allocation4 + $0x1]]
          %v350 = vld [vmem:[%s338] sm:$0x3]
          %v351 = vstv %s348
          %v352 = vadd.f32 %v350, %v351
          %v353 = vld [vmem:[%s297] sm:$0xff]
          %v354 = vld [vmem:[%s297 + $0x8] sm:$0xff]
          %v355 = vld [vmem:[%s297 + $0x10] sm:$0xff]
          %v356 = vld [vmem:[%s297 + $0x18] sm:$0xff]
          %v357 = vld [vmem:[%s297 + $0x20] sm:$0xff]
          %v358 = vld [vmem:[%s297 + $0x28] sm:$0xff]
          %v359 = vld [vmem:[%s297 + $0x30] sm:$0xff]
          %v360 = vld [vmem:[%s297 + $0x38] sm:$0xff]
          %v361 = vld [vmem:[%s297 + $0x40] sm:$0xff]
          %v362 = vld [vmem:[%s297 + $0x48] sm:$0xff]
          %v363 = vld [vmem:[%s297 + $0x50] sm:$0xff]
          %v364 = vld [vmem:[%s297 + $0x58] sm:$0xff]
          %v365 = vld [vmem:[%s297 + $0x60] sm:$0xff]
          %v366 = vld [vmem:[%s297 + $0x68] sm:$0xff]
          %v367 = vld [vmem:[%s297 + $0x70] sm:$0xff]
          %v368 = vld [vmem:[%s297 + $0x78] sm:$0xff]
          %v369 = vld [vmem:[%s297 + $0x80] sm:$0xff]
          %v370 = vld [vmem:[%s297 + $0x88] sm:$0xff]
          %v371 = vld [vmem:[%s297 + $0x90] sm:$0xff]
          %v372 = vld [vmem:[%s297 + $0x98] sm:$0xff]
          %v373 = vld [vmem:[%s297 + $0xa0] sm:$0xff]
          %v374 = vld [vmem:[%s297 + $0xa8] sm:$0xff]
          %v375 = vld [vmem:[%s297 + $0xb0] sm:$0xff]
          %v376 = vld [vmem:[%s297 + $0xb8] sm:$0xff]
          %v377 = vld [vmem:[%s297 + $0xc0] sm:$0xff]
          %v378 = vld [vmem:[%s297 + $0xc8] sm:$0xff]
          %v379 = vld [vmem:[%s297 + $0xd0] sm:$0xff]
          %v380 = vld [vmem:[%s297 + $0xd8] sm:$0xff]
          %v381 = vld [vmem:[%s297 + $0xe0] sm:$0xff]
          %v382 = vld [vmem:[%s297 + $0xe8] sm:$0xff]
          %v383 = vld [vmem:[%s297 + $0xf0] sm:$0xff]
          %v384 = vld [vmem:[%s297 + $0xf8] sm:$0xff]
          %v385 = vld [vmem:[%s297 + $0x100] sm:$0xff]
          %v386 = vld [vmem:[%s297 + $0x108] sm:$0xff]
          %v387 = vld [vmem:[%s297 + $0x110] sm:$0xff]
          %v388 = vld [vmem:[%s297 + $0x118] sm:$0xff]
          %v389 = vld [vmem:[%s297 + $0x120] sm:$0xff]
          %v390 = vld [vmem:[%s297 + $0x128] sm:$0xff]
          %v391 = vld [vmem:[%s297 + $0x130] sm:$0xff]
          %v392 = vld [vmem:[%s297 + $0x138] sm:$0xff]
          %v393 = vld [vmem:[%s297 + $0x140] sm:$0xff]
          %v394 = vld [vmem:[%s297 + $0x148] sm:$0xff]
          %v395 = vld [vmem:[%s297 + $0x150] sm:$0xff]
          %v396 = vld [vmem:[%s297 + $0x158] sm:$0xff]
          %v397 = vld [vmem:[%s297 + $0x160] sm:$0xff]
          %v398 = vld [vmem:[%s297 + $0x168] sm:$0xff]
          %v399 = vld [vmem:[%s297 + $0x170] sm:$0xff]
          %v400 = vld [vmem:[%s297 + $0x178] sm:$0xff]
          %v401 = vld [vmem:[%s297 + $0x180] sm:$0xff]
          %v402 = vld [vmem:[%s297 + $0x188] sm:$0xff]
          %v403 = vld [vmem:[%s297 + $0x190] sm:$0xff]
          %v404 = vld [vmem:[%s297 + $0x198] sm:$0xff]
          %v405 = vld [vmem:[%s297 + $0x1a0] sm:$0xff]
          %v406 = vld [vmem:[%s297 + $0x1a8] sm:$0xff]
          %v407 = vld [vmem:[%s297 + $0x1b0] sm:$0xff]
          %v408 = vld [vmem:[%s297 + $0x1b8] sm:$0xff]
          %v409 = vld [vmem:[%s297 + $0x1c0] sm:$0xff]
          %v410 = vld [vmem:[%s297 + $0x1c8] sm:$0xff]
          %v411 = vld [vmem:[%s297 + $0x1d0] sm:$0xff]
          %v412 = vld [vmem:[%s297 + $0x1d8] sm:$0xff]
          %v413 = vld [vmem:[%s297 + $0x1e0] sm:$0xff]
          %v414 = vld [vmem:[%s297 + $0x1e8] sm:$0xff]
          %v415 = vld [vmem:[%s297 + $0x1f0] sm:$0xff]
          %v416 = vld [vmem:[%s297 + $0x1f8] sm:$0xff]
          %v417 = vstv %s349
          %v418 = vmul.f32 %v417, %v353
          %v419 = vmul.f32 %v417, %v354
          %v420 = vmul.f32 %v417, %v355
          %v421 = vmul.f32 %v417, %v356
          %v422 = vmul.f32 %v417, %v357
          %v423 = vmul.f32 %v417, %v358
          %v424 = vmul.f32 %v417, %v359
          %v425 = vmul.f32 %v417, %v360
          %v426 = vmul.f32 %v417, %v361
          %v427 = vmul.f32 %v417, %v362
          %v428 = vmul.f32 %v417, %v363
          %v429 = vmul.f32 %v417, %v364
          %v430 = vmul.f32 %v417, %v365
          %v431 = vmul.f32 %v417, %v366
          %v432 = vmul.f32 %v417, %v367
          %v433 = vmul.f32 %v417, %v368
          %v434 = vmul.f32 %v417, %v369
          %v435 = vmul.f32 %v417, %v370
          %v436 = vmul.f32 %v417, %v371
          %v437 = vmul.f32 %v417, %v372
          %v438 = vmul.f32 %v417, %v373
          %v439 = vmul.f32 %v417, %v374
          %v440 = vmul.f32 %v417, %v375
          %v441 = vmul.f32 %v417, %v376
          %v442 = vmul.f32 %v417, %v377
          %v443 = vmul.f32 %v417, %v378
          %v444 = vmul.f32 %v417, %v379
          %v445 = vmul.f32 %v417, %v380
          %v446 = vmul.f32 %v417, %v381
          %v447 = vmul.f32 %v417, %v382
          %v448 = vmul.f32 %v417, %v383
          %v449 = vmul.f32 %v417, %v384
          %v450 = vmul.f32 %v417, %v385
          %v451 = vmul.f32 %v417, %v386
          %v452 = vmul.f32 %v417, %v387
          %v453 = vmul.f32 %v417, %v388
          %v454 = vmul.f32 %v417, %v389
          %v455 = vmul.f32 %v417, %v390
          %v456 = vmul.f32 %v417, %v391
          %v457 = vmul.f32 %v417, %v392
          %v458 = vmul.f32 %v417, %v393
          %v459 = vmul.f32 %v417, %v394
          %v460 = vmul.f32 %v417, %v395
          %v461 = vmul.f32 %v417, %v396
          %v462 = vmul.f32 %v417, %v397
          %v463 = vmul.f32 %v417, %v398
          %v464 = vmul.f32 %v417, %v399
          %v465 = vmul.f32 %v417, %v400
          %v466 = vmul.f32 %v417, %v401
          %v467 = vmul.f32 %v417, %v402
          %v468 = vmul.f32 %v417, %v403
          %v469 = vmul.f32 %v417, %v404
          %v470 = vmul.f32 %v417, %v405
          %v471 = vmul.f32 %v417, %v406
          %v472 = vmul.f32 %v417, %v407
          %v473 = vmul.f32 %v417, %v408
          %v474 = vmul.f32 %v417, %v409
          %v475 = vmul.f32 %v417, %v410
          %v476 = vmul.f32 %v417, %v411
          %v477 = vmul.f32 %v417, %v412
          %v478 = vmul.f32 %v417, %v413
          %v479 = vmul.f32 %v417, %v414
          %v480 = vmul.f32 %v417, %v415
          %v481 = vmul.f32 %v417, %v416
          %v483 = vlaneseq
          %v484 = vshrl.u32 %v483, 7
          %v485 = vsub.s32 0, %v484
          %v486 = vrot.slane %v352, %v485
          %v487 = vlaneseq
          %v488 = vshrl.u32 %v487, 7
          %v489 = vsub.s32 1, %v488
          %v490 = vrot.slane %v352, %v489
          %v493 = vadd.f32 %v486, %v418
          %v494 = vadd.f32 %v490, %v419
          %v495 = vadd.f32 %v486, %v420
          %v496 = vadd.f32 %v490, %v421
          %v497 = vadd.f32 %v486, %v422
          %v498 = vadd.f32 %v490, %v423
          %v499 = vadd.f32 %v486, %v424
          %v500 = vadd.f32 %v490, %v425
          %v501 = vadd.f32 %v486, %v426
          %v502 = vadd.f32 %v490, %v427
          %v503 = vadd.f32 %v486, %v428
          %v504 = vadd.f32 %v490, %v429
          %v505 = vadd.f32 %v486, %v430
          %v506 = vadd.f32 %v490, %v431
          %v507 = vadd.f32 %v486, %v432
          %v508 = vadd.f32 %v490, %v433
          %v509 = vadd.f32 %v486, %v434
          %v510 = vadd.f32 %v490, %v435
          %v511 = vadd.f32 %v486, %v436
          %v512 = vadd.f32 %v490, %v437
          %v513 = vadd.f32 %v486, %v438
          %v514 = vadd.f32 %v490, %v439
          %v515 = vadd.f32 %v486, %v440
          %v516 = vadd.f32 %v490, %v441
          %v517 = vadd.f32 %v486, %v442
          %v518 = vadd.f32 %v490, %v443
          %v519 = vadd.f32 %v486, %v444
          %v520 = vadd.f32 %v490, %v445
          %v521 = vadd.f32 %v486, %v446
          %v522 = vadd.f32 %v490, %v447
          %v523 = vadd.f32 %v486, %v448
          %v524 = vadd.f32 %v490, %v449
          %v525 = vadd.f32 %v486, %v450
          %v526 = vadd.f32 %v490, %v451
          %v527 = vadd.f32 %v486, %v452
          %v528 = vadd.f32 %v490, %v453
          %v529 = vadd.f32 %v486, %v454
          %v530 = vadd.f32 %v490, %v455
          %v531 = vadd.f32 %v486, %v456
          %v532 = vadd.f32 %v490, %v457
          %v533 = vadd.f32 %v486, %v458
          %v534 = vadd.f32 %v490, %v459
          %v535 = vadd.f32 %v486, %v460
          %v536 = vadd.f32 %v490, %v461
          %v537 = vadd.f32 %v486, %v462
          %v538 = vadd.f32 %v490, %v463
          %v539 = vadd.f32 %v486, %v464
          %v540 = vadd.f32 %v490, %v465
          %v541 = vadd.f32 %v486, %v466
          %v542 = vadd.f32 %v490, %v467
          %v543 = vadd.f32 %v486, %v468
          %v544 = vadd.f32 %v490, %v469
          %v545 = vadd.f32 %v486, %v470
          %v546 = vadd.f32 %v490, %v471
          %v547 = vadd.f32 %v486, %v472
          %v548 = vadd.f32 %v490, %v473
          %v549 = vadd.f32 %v486, %v474
          %v550 = vadd.f32 %v490, %v475
          %v551 = vadd.f32 %v486, %v476
          %v552 = vadd.f32 %v490, %v477
          %v553 = vadd.f32 %v486, %v478
          %v554 = vadd.f32 %v490, %v479
          %v555 = vadd.f32 %v486, %v480
          %v556 = vadd.f32 %v490, %v481
          %557 = vst [vmem:[#allocation2] sm:$0xff] %v493
          %558 = vst [vmem:[#allocation2 + $0x8] sm:$0xff] %v494
          %559 = vst [vmem:[#allocation2 + $0x10] sm:$0xff] %v495
          %560 = vst [vmem:[#allocation2 + $0x18] sm:$0xff] %v496
          %561 = vst [vmem:[#allocation2 + $0x20] sm:$0xff] %v497
          %562 = vst [vmem:[#allocation2 + $0x28] sm:$0xff] %v498
          %563 = vst [vmem:[#allocation2 + $0x30] sm:$0xff] %v499
          %564 = vst [vmem:[#allocation2 + $0x38] sm:$0xff] %v500
          %565 = vst [vmem:[#allocation2 + $0x40] sm:$0xff] %v501
          %566 = vst [vmem:[#allocation2 + $0x48] sm:$0xff] %v502
          %567 = vst [vmem:[#allocation2 + $0x50] sm:$0xff] %v503
          %568 = vst [vmem:[#allocation2 + $0x58] sm:$0xff] %v504
          %569 = vst [vmem:[#allocation2 + $0x60] sm:$0xff] %v505
          %570 = vst [vmem:[#allocation2 + $0x68] sm:$0xff] %v506
          %571 = vst [vmem:[#allocation2 + $0x70] sm:$0xff] %v507
          %572 = vst [vmem:[#allocation2 + $0x78] sm:$0xff] %v508
          %573 = vst [vmem:[#allocation2 + $0x80] sm:$0xff] %v509
          %574 = vst [vmem:[#allocation2 + $0x88] sm:$0xff] %v510
          %575 = vst [vmem:[#allocation2 + $0x90] sm:$0xff] %v511
          %576 = vst [vmem:[#allocation2 + $0x98] sm:$0xff] %v512
          %577 = vst [vmem:[#allocation2 + $0xa0] sm:$0xff] %v513
          %578 = vst [vmem:[#allocation2 + $0xa8] sm:$0xff] %v514
          %579 = vst [vmem:[#allocation2 + $0xb0] sm:$0xff] %v515
          %580 = vst [vmem:[#allocation2 + $0xb8] sm:$0xff] %v516
          %581 = vst [vmem:[#allocation2 + $0xc0] sm:$0xff] %v517
          %582 = vst [vmem:[#allocation2 + $0xc8] sm:$0xff] %v518
          %583 = vst [vmem:[#allocation2 + $0xd0] sm:$0xff] %v519
          %584 = vst [vmem:[#allocation2 + $0xd8] sm:$0xff] %v520
          %585 = vst [vmem:[#allocation2 + $0xe0] sm:$0xff] %v521
          %586 = vst [vmem:[#allocation2 + $0xe8] sm:$0xff] %v522
          %587 = vst [vmem:[#allocation2 + $0xf0] sm:$0xff] %v523
          %588 = vst [vmem:[#allocation2 + $0xf8] sm:$0xff] %v524
          %589 = vst [vmem:[#allocation2 + $0x100] sm:$0xff] %v525
          %590 = vst [vmem:[#allocation2 + $0x108] sm:$0xff] %v526
          %591 = vst [vmem:[#allocation2 + $0x110] sm:$0xff] %v527
          %592 = vst [vmem:[#allocation2 + $0x118] sm:$0xff] %v528
          %593 = vst [vmem:[#allocation2 + $0x120] sm:$0xff] %v529
          %594 = vst [vmem:[#allocation2 + $0x128] sm:$0xff] %v530
          %595 = vst [vmem:[#allocation2 + $0x130] sm:$0xff] %v531
          %596 = vst [vmem:[#allocation2 + $0x138] sm:$0xff] %v532
          %597 = vst [vmem:[#allocation2 + $0x140] sm:$0xff] %v533
          %598 = vst [vmem:[#allocation2 + $0x148] sm:$0xff] %v534
          %599 = vst [vmem:[#allocation2 + $0x150] sm:$0xff] %v535
          %600 = vst [vmem:[#allocation2 + $0x158] sm:$0xff] %v536
          %601 = vst [vmem:[#allocation2 + $0x160] sm:$0xff] %v537
          %602 = vst [vmem:[#allocation2 + $0x168] sm:$0xff] %v538
          %603 = vst [vmem:[#allocation2 + $0x170] sm:$0xff] %v539
          %604 = vst [vmem:[#allocation2 + $0x178] sm:$0xff] %v540
          %605 = vst [vmem:[#allocation2 + $0x180] sm:$0xff] %v541
          %606 = vst [vmem:[#allocation2 + $0x188] sm:$0xff] %v542
          %607 = vst [vmem:[#allocation2 + $0x190] sm:$0xff] %v543
          %608 = vst [vmem:[#allocation2 + $0x198] sm:$0xff] %v544
          %609 = vst [vmem:[#allocation2 + $0x1a0] sm:$0xff] %v545
          %610 = vst [vmem:[#allocation2 + $0x1a8] sm:$0xff] %v546
          %611 = vst [vmem:[#allocation2 + $0x1b0] sm:$0xff] %v547
          %612 = vst [vmem:[#allocation2 + $0x1b8] sm:$0xff] %v548
          %613 = vst [vmem:[#allocation2 + $0x1c0] sm:$0xff] %v549
          %614 = vst [vmem:[#allocation2 + $0x1c8] sm:$0xff] %v550
          %615 = vst [vmem:[#allocation2 + $0x1d0] sm:$0xff] %v551
          %616 = vst [vmem:[#allocation2 + $0x1d8] sm:$0xff] %v552
          %617 = vst [vmem:[#allocation2 + $0x1e0] sm:$0xff] %v553
          %618 = vst [vmem:[#allocation2 + $0x1e8] sm:$0xff] %v554
          %619 = vst [vmem:[#allocation2 + $0x1f0] sm:$0xff] %v555
          %620 = vst [vmem:[#allocation2 + $0x1f8] sm:$0xff] %v556
        $region52: #{tpu_custom_call.1} parent=35 // pred_fallthru
          _
        %v621 = vld [vmem:[#allocation5] sm:$0xff]
        %v622 = vld [vmem:[#allocation5 + $0x8] sm:$0xff]
        %v623 = vld [vmem:[#allocation5 + $0x10] sm:$0xff]
        %v624 = vld [vmem:[#allocation5 + $0x18] sm:$0xff]
        %v625 = vld [vmem:[#allocation5 + $0x20] sm:$0xff]
        %v626 = vld [vmem:[#allocation5 + $0x28] sm:$0xff]
        %v627 = vld [vmem:[#allocation5 + $0x30] sm:$0xff]
        %v628 = vld [vmem:[#allocation5 + $0x38] sm:$0xff]
        %v629 = vld [vmem:[#allocation5 + $0x40] sm:$0xff]
        %v630 = vld [vmem:[#allocation5 + $0x48] sm:$0xff]
        %v631 = vld [vmem:[#allocation5 + $0x50] sm:$0xff]
        %v632 = vld [vmem:[#allocation5 + $0x58] sm:$0xff]
        %v633 = vld [vmem:[#allocation5 + $0x60] sm:$0xff]
        %v634 = vld [vmem:[#allocation5 + $0x68] sm:$0xff]
        %v635 = vld [vmem:[#allocation5 + $0x70] sm:$0xff]
        %v636 = vld [vmem:[#allocation5 + $0x78] sm:$0xff]
        %v637 = vld [vmem:[#allocation5 + $0x80] sm:$0xff]
        %v638 = vld [vmem:[#allocation5 + $0x88] sm:$0xff]
        %v639 = vld [vmem:[#allocation5 + $0x90] sm:$0xff]
        %v640 = vld [vmem:[#allocation5 + $0x98] sm:$0xff]
        %v641 = vld [vmem:[#allocation5 + $0xa0] sm:$0xff]
        %v642 = vld [vmem:[#allocation5 + $0xa8] sm:$0xff]
        %v643 = vld [vmem:[#allocation5 + $0xb0] sm:$0xff]
        %v644 = vld [vmem:[#allocation5 + $0xb8] sm:$0xff]
        %v645 = vld [vmem:[#allocation5 + $0xc0] sm:$0xff]
        %v646 = vld [vmem:[#allocation5 + $0xc8] sm:$0xff]
        %v647 = vld [vmem:[#allocation5 + $0xd0] sm:$0xff]
        %v648 = vld [vmem:[#allocation5 + $0xd8] sm:$0xff]
        %v649 = vld [vmem:[#allocation5 + $0xe0] sm:$0xff]
        %v650 = vld [vmem:[#allocation5 + $0xe8] sm:$0xff]
        %v651 = vld [vmem:[#allocation5 + $0xf0] sm:$0xff]
        %v652 = vld [vmem:[#allocation5 + $0xf8] sm:$0xff]
        %v653 = vld [vmem:[#allocation5 + $0x100] sm:$0xff]
        %v654 = vld [vmem:[#allocation5 + $0x108] sm:$0xff]
        %v655 = vld [vmem:[#allocation5 + $0x110] sm:$0xff]
        %v656 = vld [vmem:[#allocation5 + $0x118] sm:$0xff]
        %v657 = vld [vmem:[#allocation5 + $0x120] sm:$0xff]
        %v658 = vld [vmem:[#allocation5 + $0x128] sm:$0xff]
        %v659 = vld [vmem:[#allocation5 + $0x130] sm:$0xff]
        %v660 = vld [vmem:[#allocation5 + $0x138] sm:$0xff]
        %v661 = vld [vmem:[#allocation5 + $0x140] sm:$0xff]
        %v662 = vld [vmem:[#allocation5 + $0x148] sm:$0xff]
        %v663 = vld [vmem:[#allocation5 + $0x150] sm:$0xff]
        %v664 = vld [vmem:[#allocation5 + $0x158] sm:$0xff]
        %v665 = vld [vmem:[#allocation5 + $0x160] sm:$0xff]
        %v666 = vld [vmem:[#allocation5 + $0x168] sm:$0xff]
        %v667 = vld [vmem:[#allocation5 + $0x170] sm:$0xff]
        %v668 = vld [vmem:[#allocation5 + $0x178] sm:$0xff]
        %v669 = vld [vmem:[#allocation5 + $0x180] sm:$0xff]
        %v670 = vld [vmem:[#allocation5 + $0x188] sm:$0xff]
        %v671 = vld [vmem:[#allocation5 + $0x190] sm:$0xff]
        %v672 = vld [vmem:[#allocation5 + $0x198] sm:$0xff]
        %v673 = vld [vmem:[#allocation5 + $0x1a0] sm:$0xff]
        %v674 = vld [vmem:[#allocation5 + $0x1a8] sm:$0xff]
        %v675 = vld [vmem:[#allocation5 + $0x1b0] sm:$0xff]
        %v676 = vld [vmem:[#allocation5 + $0x1b8] sm:$0xff]
        %v677 = vld [vmem:[#allocation5 + $0x1c0] sm:$0xff]
        %v678 = vld [vmem:[#allocation5 + $0x1c8] sm:$0xff]
        %v679 = vld [vmem:[#allocation5 + $0x1d0] sm:$0xff]
        %v680 = vld [vmem:[#allocation5 + $0x1d8] sm:$0xff]
        %v681 = vld [vmem:[#allocation5 + $0x1e0] sm:$0xff]
        %v682 = vld [vmem:[#allocation5 + $0x1e8] sm:$0xff]
        %v683 = vld [vmem:[#allocation5 + $0x1f0] sm:$0xff]
        %v684 = vld [vmem:[#allocation5 + $0x1f8] sm:$0xff]
        %v685 = vld [vmem:[#allocation5 + $0x200] sm:$0xff]
        %v686 = vld [vmem:[#allocation5 + $0x208] sm:$0xff]
        %v687 = vld [vmem:[#allocation5 + $0x210] sm:$0xff]
        %v688 = vld [vmem:[#allocation5 + $0x218] sm:$0xff]
        %v689 = vld [vmem:[#allocation5 + $0x220] sm:$0xff]
        %v690 = vld [vmem:[#allocation5 + $0x228] sm:$0xff]
        %v691 = vld [vmem:[#allocation5 + $0x230] sm:$0xff]
        %v692 = vld [vmem:[#allocation5 + $0x238] sm:$0xff]
        %v693 = vld [vmem:[#allocation5 + $0x240] sm:$0xff]
        %v694 = vld [vmem:[#allocation5 + $0x248] sm:$0xff]
        %v695 = vld [vmem:[#allocation5 + $0x250] sm:$0xff]
        %v696 = vld [vmem:[#allocation5 + $0x258] sm:$0xff]
        %v697 = vld [vmem:[#allocation5 + $0x260] sm:$0xff]
        %v698 = vld [vmem:[#allocation5 + $0x268] sm:$0xff]
        %v699 = vld [vmem:[#allocation5 + $0x270] sm:$0xff]
        %v700 = vld [vmem:[#allocation5 + $0x278] sm:$0xff]
        %v701 = vld [vmem:[#allocation5 + $0x280] sm:$0xff]
        %v702 = vld [vmem:[#allocation5 + $0x288] sm:$0xff]
        %v703 = vld [vmem:[#allocation5 + $0x290] sm:$0xff]
        %v704 = vld [vmem:[#allocation5 + $0x298] sm:$0xff]
        %v705 = vld [vmem:[#allocation5 + $0x2a0] sm:$0xff]
        %v706 = vld [vmem:[#allocation5 + $0x2a8] sm:$0xff]
        %v707 = vld [vmem:[#allocation5 + $0x2b0] sm:$0xff]
        %v708 = vld [vmem:[#allocation5 + $0x2b8] sm:$0xff]
        %v709 = vld [vmem:[#allocation5 + $0x2c0] sm:$0xff]
        %v710 = vld [vmem:[#allocation5 + $0x2c8] sm:$0xff]
        %v711 = vld [vmem:[#allocation5 + $0x2d0] sm:$0xff]
        %v712 = vld [vmem:[#allocation5 + $0x2d8] sm:$0xff]
        %v713 = vld [vmem:[#allocation5 + $0x2e0] sm:$0xff]
        %v714 = vld [vmem:[#allocation5 + $0x2e8] sm:$0xff]
        %v715 = vld [vmem:[#allocation5 + $0x2f0] sm:$0xff]
        %v716 = vld [vmem:[#allocation5 + $0x2f8] sm:$0xff]
        %v717 = vld [vmem:[#allocation5 + $0x300] sm:$0xff]
        %v718 = vld [vmem:[#allocation5 + $0x308] sm:$0xff]
        %v719 = vld [vmem:[#allocation5 + $0x310] sm:$0xff]
        %v720 = vld [vmem:[#allocation5 + $0x318] sm:$0xff]
        %v721 = vld [vmem:[#allocation5 + $0x320] sm:$0xff]
        %v722 = vld [vmem:[#allocation5 + $0x328] sm:$0xff]
        %v723 = vld [vmem:[#allocation5 + $0x330] sm:$0xff]
        %v724 = vld [vmem:[#allocation5 + $0x338] sm:$0xff]
        %v725 = vld [vmem:[#allocation5 + $0x340] sm:$0xff]
        %v726 = vld [vmem:[#allocation5 + $0x348] sm:$0xff]
        %v727 = vld [vmem:[#allocation5 + $0x350] sm:$0xff]
        %v728 = vld [vmem:[#allocation5 + $0x358] sm:$0xff]
        %v729 = vld [vmem:[#allocation5 + $0x360] sm:$0xff]
        %v730 = vld [vmem:[#allocation5 + $0x368] sm:$0xff]
        %v731 = vld [vmem:[#allocation5 + $0x370] sm:$0xff]
        %v732 = vld [vmem:[#allocation5 + $0x378] sm:$0xff]
        %v733 = vld [vmem:[#allocation5 + $0x380] sm:$0xff]
        %v734 = vld [vmem:[#allocation5 + $0x388] sm:$0xff]
        %v735 = vld [vmem:[#allocation5 + $0x390] sm:$0xff]
        %v736 = vld [vmem:[#allocation5 + $0x398] sm:$0xff]
        %v737 = vld [vmem:[#allocation5 + $0x3a0] sm:$0xff]
        %v738 = vld [vmem:[#allocation5 + $0x3a8] sm:$0xff]
        %v739 = vld [vmem:[#allocation5 + $0x3b0] sm:$0xff]
        %v740 = vld [vmem:[#allocation5 + $0x3b8] sm:$0xff]
        %v741 = vld [vmem:[#allocation5 + $0x3c0] sm:$0xff]
        %v742 = vld [vmem:[#allocation5 + $0x3c8] sm:$0xff]
        %v743 = vld [vmem:[#allocation5 + $0x3d0] sm:$0xff]
        %v744 = vld [vmem:[#allocation5 + $0x3d8] sm:$0xff]
        %v745 = vld [vmem:[#allocation5 + $0x3e0] sm:$0xff]
        %v746 = vld [vmem:[#allocation5 + $0x3e8] sm:$0xff]
        %v747 = vld [vmem:[#allocation5 + $0x3f0] sm:$0xff]
        %v748 = vld [vmem:[#allocation5 + $0x3f8] sm:$0xff]
        %v749 = vld [vmem:[%s288] sm:$0xff]
        %v750 = vld [vmem:[%s288 + $0x8] sm:$0xff]
        %v751 = vld [vmem:[%s288 + $0x10] sm:$0xff]
        %v752 = vld [vmem:[%s288 + $0x18] sm:$0xff]
        %v753 = vld [vmem:[%s288 + $0x20] sm:$0xff]
        %v754 = vld [vmem:[%s288 + $0x28] sm:$0xff]
        %v755 = vld [vmem:[%s288 + $0x30] sm:$0xff]
        %v756 = vld [vmem:[%s288 + $0x38] sm:$0xff]
        %v757 = vld [vmem:[%s288 + $0x40] sm:$0xff]
        %v758 = vld [vmem:[%s288 + $0x48] sm:$0xff]
        %v759 = vld [vmem:[%s288 + $0x50] sm:$0xff]
        %v760 = vld [vmem:[%s288 + $0x58] sm:$0xff]
        %v761 = vld [vmem:[%s288 + $0x60] sm:$0xff]
        %v762 = vld [vmem:[%s288 + $0x68] sm:$0xff]
        %v763 = vld [vmem:[%s288 + $0x70] sm:$0xff]
        %v764 = vld [vmem:[%s288 + $0x78] sm:$0xff]
        %v765 = vld [vmem:[%s288 + $0x80] sm:$0xff]
        %v766 = vld [vmem:[%s288 + $0x88] sm:$0xff]
        %v767 = vld [vmem:[%s288 + $0x90] sm:$0xff]
        %v768 = vld [vmem:[%s288 + $0x98] sm:$0xff]
        %v769 = vld [vmem:[%s288 + $0xa0] sm:$0xff]
        %v770 = vld [vmem:[%s288 + $0xa8] sm:$0xff]
        %v771 = vld [vmem:[%s288 + $0xb0] sm:$0xff]
        %v772 = vld [vmem:[%s288 + $0xb8] sm:$0xff]
        %v773 = vld [vmem:[%s288 + $0xc0] sm:$0xff]
        %v774 = vld [vmem:[%s288 + $0xc8] sm:$0xff]
        %v775 = vld [vmem:[%s288 + $0xd0] sm:$0xff]
        %v776 = vld [vmem:[%s288 + $0xd8] sm:$0xff]
        %v777 = vld [vmem:[%s288 + $0xe0] sm:$0xff]
        %v778 = vld [vmem:[%s288 + $0xe8] sm:$0xff]
        %v779 = vld [vmem:[%s288 + $0xf0] sm:$0xff]
        %v780 = vld [vmem:[%s288 + $0xf8] sm:$0xff]
        %v781 = vld [vmem:[%s288 + $0x100] sm:$0xff]
        %v782 = vld [vmem:[%s288 + $0x108] sm:$0xff]
        %v783 = vld [vmem:[%s288 + $0x110] sm:$0xff]
        %v784 = vld [vmem:[%s288 + $0x118] sm:$0xff]
        %v785 = vld [vmem:[%s288 + $0x120] sm:$0xff]
        %v786 = vld [vmem:[%s288 + $0x128] sm:$0xff]
        %v787 = vld [vmem:[%s288 + $0x130] sm:$0xff]
        %v788 = vld [vmem:[%s288 + $0x138] sm:$0xff]
        %v789 = vld [vmem:[%s288 + $0x140] sm:$0xff]
        %v790 = vld [vmem:[%s288 + $0x148] sm:$0xff]
        %v791 = vld [vmem:[%s288 + $0x150] sm:$0xff]
        %v792 = vld [vmem:[%s288 + $0x158] sm:$0xff]
        %v793 = vld [vmem:[%s288 + $0x160] sm:$0xff]
        %v794 = vld [vmem:[%s288 + $0x168] sm:$0xff]
        %v795 = vld [vmem:[%s288 + $0x170] sm:$0xff]
        %v796 = vld [vmem:[%s288 + $0x178] sm:$0xff]
        %v797 = vld [vmem:[%s288 + $0x180] sm:$0xff]
        %v798 = vld [vmem:[%s288 + $0x188] sm:$0xff]
        %v799 = vld [vmem:[%s288 + $0x190] sm:$0xff]
        %v800 = vld [vmem:[%s288 + $0x198] sm:$0xff]
        %v801 = vld [vmem:[%s288 + $0x1a0] sm:$0xff]
        %v802 = vld [vmem:[%s288 + $0x1a8] sm:$0xff]
        %v803 = vld [vmem:[%s288 + $0x1b0] sm:$0xff]
        %v804 = vld [vmem:[%s288 + $0x1b8] sm:$0xff]
        %v805 = vld [vmem:[%s288 + $0x1c0] sm:$0xff]
        %v806 = vld [vmem:[%s288 + $0x1c8] sm:$0xff]
        %v807 = vld [vmem:[%s288 + $0x1d0] sm:$0xff]
        %v808 = vld [vmem:[%s288 + $0x1d8] sm:$0xff]
        %v809 = vld [vmem:[%s288 + $0x1e0] sm:$0xff]
        %v810 = vld [vmem:[%s288 + $0x1e8] sm:$0xff]
        %v811 = vld [vmem:[%s288 + $0x1f0] sm:$0xff]
        %v812 = vld [vmem:[%s288 + $0x1f8] sm:$0xff]
        %v813 = vld [vmem:[%s288 + $0x200] sm:$0xff]
        %v814 = vld [vmem:[%s288 + $0x208] sm:$0xff]
        %v815 = vld [vmem:[%s288 + $0x210] sm:$0xff]
        %v816 = vld [vmem:[%s288 + $0x218] sm:$0xff]
        %v817 = vld [vmem:[%s288 + $0x220] sm:$0xff]
        %v818 = vld [vmem:[%s288 + $0x228] sm:$0xff]
        %v819 = vld [vmem:[%s288 + $0x230] sm:$0xff]
        %v820 = vld [vmem:[%s288 + $0x238] sm:$0xff]
        %v821 = vld [vmem:[%s288 + $0x240] sm:$0xff]
        %v822 = vld [vmem:[%s288 + $0x248] sm:$0xff]
        %v823 = vld [vmem:[%s288 + $0x250] sm:$0xff]
        %v824 = vld [vmem:[%s288 + $0x258] sm:$0xff]
        %v825 = vld [vmem:[%s288 + $0x260] sm:$0xff]
        %v826 = vld [vmem:[%s288 + $0x268] sm:$0xff]
        %v827 = vld [vmem:[%s288 + $0x270] sm:$0xff]
        %v828 = vld [vmem:[%s288 + $0x278] sm:$0xff]
        %v829 = vld [vmem:[%s288 + $0x280] sm:$0xff]
        %v830 = vld [vmem:[%s288 + $0x288] sm:$0xff]
        %v831 = vld [vmem:[%s288 + $0x290] sm:$0xff]
        %v832 = vld [vmem:[%s288 + $0x298] sm:$0xff]
        %v833 = vld [vmem:[%s288 + $0x2a0] sm:$0xff]
        %v834 = vld [vmem:[%s288 + $0x2a8] sm:$0xff]
        %v835 = vld [vmem:[%s288 + $0x2b0] sm:$0xff]
        %v836 = vld [vmem:[%s288 + $0x2b8] sm:$0xff]
        %v837 = vld [vmem:[%s288 + $0x2c0] sm:$0xff]
        %v838 = vld [vmem:[%s288 + $0x2c8] sm:$0xff]
        %v839 = vld [vmem:[%s288 + $0x2d0] sm:$0xff]
        %v840 = vld [vmem:[%s288 + $0x2d8] sm:$0xff]
        %v841 = vld [vmem:[%s288 + $0x2e0] sm:$0xff]
        %v842 = vld [vmem:[%s288 + $0x2e8] sm:$0xff]
        %v843 = vld [vmem:[%s288 + $0x2f0] sm:$0xff]
        %v844 = vld [vmem:[%s288 + $0x2f8] sm:$0xff]
        %v845 = vld [vmem:[%s288 + $0x300] sm:$0xff]
        %v846 = vld [vmem:[%s288 + $0x308] sm:$0xff]
        %v847 = vld [vmem:[%s288 + $0x310] sm:$0xff]
        %v848 = vld [vmem:[%s288 + $0x318] sm:$0xff]
        %v849 = vld [vmem:[%s288 + $0x320] sm:$0xff]
        %v850 = vld [vmem:[%s288 + $0x328] sm:$0xff]
        %v851 = vld [vmem:[%s288 + $0x330] sm:$0xff]
        %v852 = vld [vmem:[%s288 + $0x338] sm:$0xff]
        %v853 = vld [vmem:[%s288 + $0x340] sm:$0xff]
        %v854 = vld [vmem:[%s288 + $0x348] sm:$0xff]
        %v855 = vld [vmem:[%s288 + $0x350] sm:$0xff]
        %v856 = vld [vmem:[%s288 + $0x358] sm:$0xff]
        %v857 = vld [vmem:[%s288 + $0x360] sm:$0xff]
        %v858 = vld [vmem:[%s288 + $0x368] sm:$0xff]
        %v859 = vld [vmem:[%s288 + $0x370] sm:$0xff]
        %v860 = vld [vmem:[%s288 + $0x378] sm:$0xff]
        %v861 = vld [vmem:[%s288 + $0x380] sm:$0xff]
        %v862 = vld [vmem:[%s288 + $0x388] sm:$0xff]
        %v863 = vld [vmem:[%s288 + $0x390] sm:$0xff]
        %v864 = vld [vmem:[%s288 + $0x398] sm:$0xff]
        %v865 = vld [vmem:[%s288 + $0x3a0] sm:$0xff]
        %v866 = vld [vmem:[%s288 + $0x3a8] sm:$0xff]
        %v867 = vld [vmem:[%s288 + $0x3b0] sm:$0xff]
        %v868 = vld [vmem:[%s288 + $0x3b8] sm:$0xff]
        %v869 = vld [vmem:[%s288 + $0x3c0] sm:$0xff]
        %v870 = vld [vmem:[%s288 + $0x3c8] sm:$0xff]
        %v871 = vld [vmem:[%s288 + $0x3d0] sm:$0xff]
        %v872 = vld [vmem:[%s288 + $0x3d8] sm:$0xff]
        %v873 = vld [vmem:[%s288 + $0x3e0] sm:$0xff]
        %v874 = vld [vmem:[%s288 + $0x3e8] sm:$0xff]
        %v875 = vld [vmem:[%s288 + $0x3f0] sm:$0xff]
        %v876 = vld [vmem:[%s288 + $0x3f8] sm:$0xff]
        %v877 = vld [vmem:[#allocation2] sm:$0xff]
        %v878 = vld [vmem:[#allocation2 + $0x8] sm:$0xff]
        %v879 = vld [vmem:[#allocation2 + $0x10] sm:$0xff]
        %v880 = vld [vmem:[#allocation2 + $0x18] sm:$0xff]
        %v881 = vld [vmem:[#allocation2 + $0x20] sm:$0xff]
        %v882 = vld [vmem:[#allocation2 + $0x28] sm:$0xff]
        %v883 = vld [vmem:[#allocation2 + $0x30] sm:$0xff]
        %v884 = vld [vmem:[#allocation2 + $0x38] sm:$0xff]
        %v885 = vld [vmem:[#allocation2 + $0x40] sm:$0xff]
        %v886 = vld [vmem:[#allocation2 + $0x48] sm:$0xff]
        %v887 = vld [vmem:[#allocation2 + $0x50] sm:$0xff]
        %v888 = vld [vmem:[#allocation2 + $0x58] sm:$0xff]
        %v889 = vld [vmem:[#allocation2 + $0x60] sm:$0xff]
        %v890 = vld [vmem:[#allocation2 + $0x68] sm:$0xff]
        %v891 = vld [vmem:[#allocation2 + $0x70] sm:$0xff]
        %v892 = vld [vmem:[#allocation2 + $0x78] sm:$0xff]
        %v893 = vld [vmem:[#allocation2 + $0x80] sm:$0xff]
        %v894 = vld [vmem:[#allocation2 + $0x88] sm:$0xff]
        %v895 = vld [vmem:[#allocation2 + $0x90] sm:$0xff]
        %v896 = vld [vmem:[#allocation2 + $0x98] sm:$0xff]
        %v897 = vld [vmem:[#allocation2 + $0xa0] sm:$0xff]
        %v898 = vld [vmem:[#allocation2 + $0xa8] sm:$0xff]
        %v899 = vld [vmem:[#allocation2 + $0xb0] sm:$0xff]
        %v900 = vld [vmem:[#allocation2 + $0xb8] sm:$0xff]
        %v901 = vld [vmem:[#allocation2 + $0xc0] sm:$0xff]
        %v902 = vld [vmem:[#allocation2 + $0xc8] sm:$0xff]
        %v903 = vld [vmem:[#allocation2 + $0xd0] sm:$0xff]
        %v904 = vld [vmem:[#allocation2 + $0xd8] sm:$0xff]
        %v905 = vld [vmem:[#allocation2 + $0xe0] sm:$0xff]
        %v906 = vld [vmem:[#allocation2 + $0xe8] sm:$0xff]
        %v907 = vld [vmem:[#allocation2 + $0xf0] sm:$0xff]
        %v908 = vld [vmem:[#allocation2 + $0xf8] sm:$0xff]
        %v909 = vld [vmem:[#allocation2 + $0x100] sm:$0xff]
        %v910 = vld [vmem:[#allocation2 + $0x108] sm:$0xff]
        %v911 = vld [vmem:[#allocation2 + $0x110] sm:$0xff]
        %v912 = vld [vmem:[#allocation2 + $0x118] sm:$0xff]
        %v913 = vld [vmem:[#allocation2 + $0x120] sm:$0xff]
        %v914 = vld [vmem:[#allocation2 + $0x128] sm:$0xff]
        %v915 = vld [vmem:[#allocation2 + $0x130] sm:$0xff]
        %v916 = vld [vmem:[#allocation2 + $0x138] sm:$0xff]
        %v917 = vld [vmem:[#allocation2 + $0x140] sm:$0xff]
        %v918 = vld [vmem:[#allocation2 + $0x148] sm:$0xff]
        %v919 = vld [vmem:[#allocation2 + $0x150] sm:$0xff]
        %v920 = vld [vmem:[#allocation2 + $0x158] sm:$0xff]
        %v921 = vld [vmem:[#allocation2 + $0x160] sm:$0xff]
        %v922 = vld [vmem:[#allocation2 + $0x168] sm:$0xff]
        %v923 = vld [vmem:[#allocation2 + $0x170] sm:$0xff]
        %v924 = vld [vmem:[#allocation2 + $0x178] sm:$0xff]
        %v925 = vld [vmem:[#allocation2 + $0x180] sm:$0xff]
        %v926 = vld [vmem:[#allocation2 + $0x188] sm:$0xff]
        %v927 = vld [vmem:[#allocation2 + $0x190] sm:$0xff]
        %v928 = vld [vmem:[#allocation2 + $0x198] sm:$0xff]
        %v929 = vld [vmem:[#allocation2 + $0x1a0] sm:$0xff]
        %v930 = vld [vmem:[#allocation2 + $0x1a8] sm:$0xff]
        %v931 = vld [vmem:[#allocation2 + $0x1b0] sm:$0xff]
        %v932 = vld [vmem:[#allocation2 + $0x1b8] sm:$0xff]
        %v933 = vld [vmem:[#allocation2 + $0x1c0] sm:$0xff]
        %v934 = vld [vmem:[#allocation2 + $0x1c8] sm:$0xff]
        %v935 = vld [vmem:[#allocation2 + $0x1d0] sm:$0xff]
        %v936 = vld [vmem:[#allocation2 + $0x1d8] sm:$0xff]
        %v937 = vld [vmem:[#allocation2 + $0x1e0] sm:$0xff]
        %v938 = vld [vmem:[#allocation2 + $0x1e8] sm:$0xff]
        %v939 = vld [vmem:[#allocation2 + $0x1f0] sm:$0xff]
        %v940 = vld [vmem:[#allocation2 + $0x1f8] sm:$0xff]
        %941 = vmatprep.subr.mxu0 %v750
        %942 = vmatpush1.msra.mxu0 %v749
        %943 = vmatprep.subr.mxu0 %v752
        %944 = vmatpush1.msra.mxu0 %v751
        %945 = vmatprep.subr.mxu0 %v754
        %946 = vmatpush1.msra.mxu0 %v753
        %947 = vmatprep.subr.mxu0 %v756
        %948 = vmatpush1.msra.mxu0 %v755
        %949 = vmatprep.subr.mxu0 %v758
        %950 = vmatpush1.msra.mxu0 %v757
        %951 = vmatprep.subr.mxu0 %v760
        %952 = vmatpush1.msra.mxu0 %v759
        %953 = vmatprep.subr.mxu0 %v762
        %954 = vmatpush1.msra.mxu0 %v761
        %955 = vmatprep.subr.mxu0 %v764
        %956 = vmatpush1.msra.mxu0 %v763
        %957 = vmatprep.subr.mxu0 %v766
        %958 = vmatpush1.msra.mxu0 %v765
        %959 = vmatprep.subr.mxu0 %v768
        %960 = vmatpush1.msra.mxu0 %v767
        %961 = vmatprep.subr.mxu0 %v770
        %962 = vmatpush1.msra.mxu0 %v769
        %963 = vmatprep.subr.mxu0 %v772
        %964 = vmatpush1.msra.mxu0 %v771
        %965 = vmatprep.subr.mxu0 %v774
        %966 = vmatpush1.msra.mxu0 %v773
        %967 = vmatprep.subr.mxu0 %v776
        %968 = vmatpush1.msra.mxu0 %v775
        %969 = vmatprep.subr.mxu0 %v778
        %970 = vmatpush1.msra.mxu0 %v777
        %971 = vmatprep.subr.mxu0 %v780
        %972 = vmatpush1.msra.mxu0 %v779
        %973 = vmatprep.subr.mxu0 %v782
        %974 = vmatpush1.msra.mxu0 %v781
        %975 = vmatprep.subr.mxu0 %v784
        %976 = vmatpush1.msra.mxu0 %v783
        %977 = vmatprep.subr.mxu0 %v786
        %978 = vmatpush1.msra.mxu0 %v785
        %979 = vmatprep.subr.mxu0 %v788
        %980 = vmatpush1.msra.mxu0 %v787
        %981 = vmatprep.subr.mxu0 %v790
        %982 = vmatpush1.msra.mxu0 %v789
        %983 = vmatprep.subr.mxu0 %v792
        %984 = vmatpush1.msra.mxu0 %v791
        %985 = vmatprep.subr.mxu0 %v794
        %986 = vmatpush1.msra.mxu0 %v793
        %987 = vmatprep.subr.mxu0 %v796
        %988 = vmatpush1.msra.mxu0 %v795
        %989 = vmatprep.subr.mxu0 %v798
        %990 = vmatpush1.msra.mxu0 %v797
        %991 = vmatprep.subr.mxu0 %v800
        %992 = vmatpush1.msra.mxu0 %v799
        %993 = vmatprep.subr.mxu0 %v802
        %994 = vmatpush1.msra.mxu0 %v801
        %995 = vmatprep.subr.mxu0 %v804
        %996 = vmatpush1.msra.mxu0 %v803
        %997 = vmatprep.subr.mxu0 %v806
        %998 = vmatpush1.msra.mxu0 %v805
        %999 = vmatprep.subr.mxu0 %v808
        %1000 = vmatpush1.msra.mxu0 %v807
        %1001 = vmatprep.subr.mxu0 %v810
        %1002 = vmatpush1.msra.mxu0 %v809
        %1003 = vmatprep.subr.mxu0 %v812
        %1004 = vmatpush1.msra.mxu0 %v811
        %1005 = vmatprep.mubr.f32.mxu0 %v622
        %1006 = vmatmul.mubr.f32.gmra.mrb[0].mxu0 %v621
        %v1007 = vpop.f32.mrb[0].mxu0
        %v1008 = vadd.f32 0.0, %v1007
        %v1009 = vpop.f32.mrb[0].mxu0
        %v1010 = vadd.f32 0.0, %v1009
        %1011 = vmatprep.mubr.f32.mxu0 %v626
        %1012 = vmatmul.mubr.f32.gmra.mrb[0].mxu0 %v625
        %v1013 = vpop.f32.mrb[0].mxu0
        %v1014 = vadd.f32 0.0, %v1013
        %v1015 = vpop.f32.mrb[0].mxu0
        %v1016 = vadd.f32 0.0, %v1015
        %1017 = vmatprep.mubr.f32.mxu0 %v630
        %1018 = vmatmul.mubr.f32.gmra.mrb[0].mxu0 %v629
        %v1019 = vpop.f32.mrb[0].mxu0
        %v1020 = vadd.f32 0.0, %v1019
        %v1021 = vpop.f32.mrb[0].mxu0
        %v1022 = vadd.f32 0.0, %v1021
        %1023 = vmatprep.mubr.f32.mxu0 %v634
        %1024 = vmatmul.mubr.f32.gmra.mrb[0].mxu0 %v633
        %v1025 = vpop.f32.mrb[0].mxu0
        %v1026 = vadd.f32 0.0, %v1025
        %v1027 = vpop.f32.mrb[0].mxu0
        %v1028 = vadd.f32 0.0, %v1027
        %1029 = vmatprep.mubr.f32.mxu0 %v638
        %1030 = vmatmul.mubr.f32.gmra.mrb[0].mxu0 %v637
        %v1031 = vpop.f32.mrb[0].mxu0
        %v1032 = vadd.f32 0.0, %v1031
        %v1033 = vpop.f32.mrb[0].mxu0
        %v1034 = vadd.f32 0.0, %v1033
        %1035 = vmatprep.mubr.f32.mxu0 %v642
        %1036 = vmatmul.mubr.f32.gmra.mrb[0].mxu0 %v641
        %v1037 = vpop.f32.mrb[0].mxu0
        %v1038 = vadd.f32 0.0, %v1037
        %v1039 = vpop.f32.mrb[0].mxu0
        %v1040 = vadd.f32 0.0, %v1039
        %1041 = vmatprep.mubr.f32.mxu0 %v646
        %1042 = vmatmul.mubr.f32.gmra.mrb[0].mxu0 %v645
        %v1043 = vpop.f32.mrb[0].mxu0
        %v1044 = vadd.f32 0.0, %v1043
        %v1045 = vpop.f32.mrb[0].mxu0
        %v1046 = vadd.f32 0.0, %v1045
        %1047 = vmatprep.mubr.f32.mxu0 %v650
        %1048 = vmatmul.mubr.f32.gmra.mrb[0].mxu0 %v649
        %v1049 = vpop.f32.mrb[0].mxu0
        %v1050 = vadd.f32 0.0, %v1049
        %v1051 = vpop.f32.mrb[0].mxu0
        %v1052 = vadd.f32 0.0, %v1051
        %1053 = vmatprep.mubr.f32.mxu0 %v654
        %1054 = vmatmul.mubr.f32.gmra.mrb[0].mxu0 %v653
        %v1055 = vpop.f32.mrb[0].mxu0
        %v1056 = vadd.f32 0.0, %v1055
        %v1057 = vpop.f32.mrb[0].mxu0
        %v1058 = vadd.f32 0.0, %v1057
        %1059 = vmatprep.mubr.f32.mxu0 %v658
        %1060 = vmatmul.mubr.f32.gmra.mrb[0].mxu0 %v657
        %v1061 = vpop.f32.mrb[0].mxu0
        %v1062 = vadd.f32 0.0, %v1061
        %v1063 = vpop.f32.mrb[0].mxu0
        %v1064 = vadd.f32 0.0, %v1063
        %1065 = vmatprep.mubr.f32.mxu0 %v662
        %1066 = vmatmul.mubr.f32.gmra.mrb[0].mxu0 %v661
        %v1067 = vpop.f32.mrb[0].mxu0
        %v1068 = vadd.f32 0.0, %v1067
        %v1069 = vpop.f32.mrb[0].mxu0
        %v1070 = vadd.f32 0.0, %v1069
        %1071 = vmatprep.mubr.f32.mxu0 %v666
        %1072 = vmatmul.mubr.f32.gmra.mrb[0].mxu0 %v665
        %v1073 = vpop.f32.mrb[0].mxu0
        %v1074 = vadd.f32 0.0, %v1073
        %v1075 = vpop.f32.mrb[0].mxu0
        %v1076 = vadd.f32 0.0, %v1075
        %1077 = vmatprep.mubr.f32.mxu0 %v670
        %1078 = vmatmul.mubr.f32.gmra.mrb[0].mxu0 %v669
        %v1079 = vpop.f32.mrb[0].mxu0
        %v1080 = vadd.f32 0.0, %v1079
        %v1081 = vpop.f32.mrb[0].mxu0
        %v1082 = vadd.f32 0.0, %v1081
        %1083 = vmatprep.mubr.f32.mxu0 %v674
        %1084 = vmatmul.mubr.f32.gmra.mrb[0].mxu0 %v673
        %v1085 = vpop.f32.mrb[0].mxu0
        %v1086 = vadd.f32 0.0, %v1085
        %v1087 = vpop.f32.mrb[0].mxu0
        %v1088 = vadd.f32 0.0, %v1087
        %1089 = vmatprep.mubr.f32.mxu0 %v678
        %1090 = vmatmul.mubr.f32.gmra.mrb[0].mxu0 %v677
        %v1091 = vpop.f32.mrb[0].mxu0
        %v1092 = vadd.f32 0.0, %v1091
        %v1093 = vpop.f32.mrb[0].mxu0
        %v1094 = vadd.f32 0.0, %v1093
        %1095 = vmatprep.mubr.f32.mxu0 %v682
        %1096 = vmatmul.mubr.f32.gmra.mrb[0].mxu0 %v681
        %v1097 = vpop.f32.mrb[0].mxu0
        %v1098 = vadd.f32 0.0, %v1097
        %v1099 = vpop.f32.mrb[0].mxu0
        %v1100 = vadd.f32 0.0, %v1099
        %1101 = vmatprep.mubr.f32.mxu0 %v686
        %1102 = vmatmul.mubr.f32.gmra.mrb[0].mxu0 %v685
        %v1103 = vpop.f32.mrb[0].mxu0
        %v1104 = vadd.f32 0.0, %v1103
        %v1105 = vpop.f32.mrb[0].mxu0
        %v1106 = vadd.f32 0.0, %v1105
        %1107 = vmatprep.mubr.f32.mxu0 %v690
        %1108 = vmatmul.mubr.f32.gmra.mrb[0].mxu0 %v689
        %v1109 = vpop.f32.mrb[0].mxu0
        %v1110 = vadd.f32 0.0, %v1109
        %v1111 = vpop.f32.mrb[0].mxu0
        %v1112 = vadd.f32 0.0, %v1111
        %1113 = vmatprep.mubr.f32.mxu0 %v694
        %1114 = vmatmul.mubr.f32.gmra.mrb[0].mxu0 %v693
        %v1115 = vpop.f32.mrb[0].mxu0
        %v1116 = vadd.f32 0.0, %v1115
        %v1117 = vpop.f32.mrb[0].mxu0
        %v1118 = vadd.f32 0.0, %v1117
        %1119 = vmatprep.mubr.f32.mxu0 %v698
        %1120 = vmatmul.mubr.f32.gmra.mrb[0].mxu0 %v697
        %v1121 = vpop.f32.mrb[0].mxu0
        %v1122 = vadd.f32 0.0, %v1121
        %v1123 = vpop.f32.mrb[0].mxu0
        %v1124 = vadd.f32 0.0, %v1123
        %1125 = vmatprep.mubr.f32.mxu0 %v702
        %1126 = vmatmul.mubr.f32.gmra.mrb[0].mxu0 %v701
        %v1127 = vpop.f32.mrb[0].mxu0
        %v1128 = vadd.f32 0.0, %v1127
        %v1129 = vpop.f32.mrb[0].mxu0
        %v1130 = vadd.f32 0.0, %v1129
        %1131 = vmatprep.mubr.f32.mxu0 %v706
        %1132 = vmatmul.mubr.f32.gmra.mrb[0].mxu0 %v705
        %v1133 = vpop.f32.mrb[0].mxu0
        %v1134 = vadd.f32 0.0, %v1133
        %v1135 = vpop.f32.mrb[0].mxu0
        %v1136 = vadd.f32 0.0, %v1135
        %1137 = vmatprep.mubr.f32.mxu0 %v710
        %1138 = vmatmul.mubr.f32.gmra.mrb[0].mxu0 %v709
        %v1139 = vpop.f32.mrb[0].mxu0
        %v1140 = vadd.f32 0.0, %v1139
        %v1141 = vpop.f32.mrb[0].mxu0
        %v1142 = vadd.f32 0.0, %v1141
        %1143 = vmatprep.mubr.f32.mxu0 %v714
        %1144 = vmatmul.mubr.f32.gmra.mrb[0].mxu0 %v713
        %v1145 = vpop.f32.mrb[0].mxu0
        %v1146 = vadd.f32 0.0, %v1145
        %v1147 = vpop.f32.mrb[0].mxu0
        %v1148 = vadd.f32 0.0, %v1147
        %1149 = vmatprep.mubr.f32.mxu0 %v718
        %1150 = vmatmul.mubr.f32.gmra.mrb[0].mxu0 %v717
        %v1151 = vpop.f32.mrb[0].mxu0
        %v1152 = vadd.f32 0.0, %v1151
        %v1153 = vpop.f32.mrb[0].mxu0
        %v1154 = vadd.f32 0.0, %v1153
        %1155 = vmatprep.mubr.f32.mxu0 %v722
        %1156 = vmatmul.mubr.f32.gmra.mrb[0].mxu0 %v721
        %v1157 = vpop.f32.mrb[0].mxu0
        %v1158 = vadd.f32 0.0, %v1157
        %v1159 = vpop.f32.mrb[0].mxu0
        %v1160 = vadd.f32 0.0, %v1159
        %1161 = vmatprep.mubr.f32.mxu0 %v726
        %1162 = vmatmul.mubr.f32.gmra.mrb[0].mxu0 %v725
        %v1163 = vpop.f32.mrb[0].mxu0
        %v1164 = vadd.f32 0.0, %v1163
        %v1165 = vpop.f32.mrb[0].mxu0
        %v1166 = vadd.f32 0.0, %v1165
        %1167 = vmatprep.mubr.f32.mxu0 %v730
        %1168 = vmatmul.mubr.f32.gmra.mrb[0].mxu0 %v729
        %v1169 = vpop.f32.mrb[0].mxu0
        %v1170 = vadd.f32 0.0, %v1169
        %v1171 = vpop.f32.mrb[0].mxu0
        %v1172 = vadd.f32 0.0, %v1171
        %1173 = vmatprep.mubr.f32.mxu0 %v734
        %1174 = vmatmul.mubr.f32.gmra.mrb[0].mxu0 %v733
        %v1175 = vpop.f32.mrb[0].mxu0
        %v1176 = vadd.f32 0.0, %v1175
        %v1177 = vpop.f32.mrb[0].mxu0
        %v1178 = vadd.f32 0.0, %v1177
        %1179 = vmatprep.mubr.f32.mxu0 %v738
        %1180 = vmatmul.mubr.f32.gmra.mrb[0].mxu0 %v737
        %v1181 = vpop.f32.mrb[0].mxu0
        %v1182 = vadd.f32 0.0, %v1181
        %v1183 = vpop.f32.mrb[0].mxu0
        %v1184 = vadd.f32 0.0, %v1183
        %1185 = vmatprep.mubr.f32.mxu0 %v742
        %1186 = vmatmul.mubr.f32.gmra.mrb[0].mxu0 %v741
        %v1187 = vpop.f32.mrb[0].mxu0
        %v1188 = vadd.f32 0.0, %v1187
        %v1189 = vpop.f32.mrb[0].mxu0
        %v1190 = vadd.f32 0.0, %v1189
        %1191 = vmatprep.mubr.f32.mxu0 %v746
        %1192 = vmatmul.mubr.f32.gmra.mrb[0].mxu0 %v745
        %v1193 = vpop.f32.mrb[0].mxu0
        %v1194 = vadd.f32 0.0, %v1193
        %v1195 = vpop.f32.mrb[0].mxu0
        %v1196 = vadd.f32 0.0, %v1195
        %1197 = vdwg.mxu0
        %1198 = vmatprep.subr.mxu0 %v814
        %1199 = vmatpush1.msra.mxu0 %v813
        %1200 = vmatprep.subr.mxu0 %v816
        %1201 = vmatpush1.msra.mxu0 %v815
        %1202 = vmatprep.subr.mxu0 %v818
        %1203 = vmatpush1.msra.mxu0 %v817
        %1204 = vmatprep.subr.mxu0 %v820
        %1205 = vmatpush1.msra.mxu0 %v819
        %1206 = vmatprep.subr.mxu0 %v822
        %1207 = vmatpush1.msra.mxu0 %v821
        %1208 = vmatprep.subr.mxu0 %v824
        %1209 = vmatpush1.msra.mxu0 %v823
        %1210 = vmatprep.subr.mxu0 %v826
        %1211 = vmatpush1.msra.mxu0 %v825
        %1212 = vmatprep.subr.mxu0 %v828
        %1213 = vmatpush1.msra.mxu0 %v827
        %1214 = vmatprep.subr.mxu0 %v830
        %1215 = vmatpush1.msra.mxu0 %v829
        %1216 = vmatprep.subr.mxu0 %v832
        %1217 = vmatpush1.msra.mxu0 %v831
        %1218 = vmatprep.subr.mxu0 %v834
        %1219 = vmatpush1.msra.mxu0 %v833
        %1220 = vmatprep.subr.mxu0 %v836
        %1221 = vmatpush1.msra.mxu0 %v835
        %1222 = vmatprep.subr.mxu0 %v838
        %1223 = vmatpush1.msra.mxu0 %v837
        %1224 = vmatprep.subr.mxu0 %v840
        %1225 = vmatpush1.msra.mxu0 %v839
        %1226 = vmatprep.subr.mxu0 %v842
        %1227 = vmatpush1.msra.mxu0 %v841
        %1228 = vmatprep.subr.mxu0 %v844
        %1229 = vmatpush1.msra.mxu0 %v843
        %1230 = vmatprep.subr.mxu0 %v846
        %1231 = vmatpush1.msra.mxu0 %v845
        %1232 = vmatprep.subr.mxu0 %v848
        %1233 = vmatpush1.msra.mxu0 %v847
        %1234 = vmatprep.subr.mxu0 %v850
        %1235 = vmatpush1.msra.mxu0 %v849
        %1236 = vmatprep.subr.mxu0 %v852
        %1237 = vmatpush1.msra.mxu0 %v851
        %1238 = vmatprep.subr.mxu0 %v854
        %1239 = vmatpush1.msra.mxu0 %v853
        %1240 = vmatprep.subr.mxu0 %v856
        %1241 = vmatpush1.msra.mxu0 %v855
        %1242 = vmatprep.subr.mxu0 %v858
        %1243 = vmatpush1.msra.mxu0 %v857
        %1244 = vmatprep.subr.mxu0 %v860
        %1245 = vmatpush1.msra.mxu0 %v859
        %1246 = vmatprep.subr.mxu0 %v862
        %1247 = vmatpush1.msra.mxu0 %v861
        %1248 = vmatprep.subr.mxu0 %v864
        %1249 = vmatpush1.msra.mxu0 %v863
        %1250 = vmatprep.subr.mxu0 %v866
        %1251 = vmatpush1.msra.mxu0 %v865
        %1252 = vmatprep.subr.mxu0 %v868
        %1253 = vmatpush1.msra.mxu0 %v867
        %1254 = vmatprep.subr.mxu0 %v870
        %1255 = vmatpush1.msra.mxu0 %v869
        %1256 = vmatprep.subr.mxu0 %v872
        %1257 = vmatpush1.msra.mxu0 %v871
        %1258 = vmatprep.subr.mxu0 %v874
        %1259 = vmatpush1.msra.mxu0 %v873
        %1260 = vmatprep.subr.mxu0 %v876
        %1261 = vmatpush1.msra.mxu0 %v875
        %1262 = vmatprep.mubr.f32.mxu0 %v624
        %1263 = vmatmul.mubr.f32.gmra.mrb[0].mxu0 %v623
        %v1264 = vpop.f32.mrb[0].mxu0
        %v1265 = vadd.f32 %v1008, %v1264
        %v1266 = vpop.f32.mrb[0].mxu0
        %v1267 = vadd.f32 %v1010, %v1266
        %1268 = vmatprep.mubr.f32.mxu0 %v628
        %1269 = vmatmul.mubr.f32.gmra.mrb[0].mxu0 %v627
        %v1270 = vpop.f32.mrb[0].mxu0
        %v1271 = vadd.f32 %v1014, %v1270
        %v1272 = vpop.f32.mrb[0].mxu0
        %v1273 = vadd.f32 %v1016, %v1272
        %1274 = vmatprep.mubr.f32.mxu0 %v632
        %1275 = vmatmul.mubr.f32.gmra.mrb[0].mxu0 %v631
        %v1276 = vpop.f32.mrb[0].mxu0
        %v1277 = vadd.f32 %v1020, %v1276
        %v1278 = vpop.f32.mrb[0].mxu0
        %v1279 = vadd.f32 %v1022, %v1278
        %1280 = vmatprep.mubr.f32.mxu0 %v636
        %1281 = vmatmul.mubr.f32.gmra.mrb[0].mxu0 %v635
        %v1282 = vpop.f32.mrb[0].mxu0
        %v1283 = vadd.f32 %v1026, %v1282
        %v1284 = vpop.f32.mrb[0].mxu0
        %v1285 = vadd.f32 %v1028, %v1284
        %1286 = vmatprep.mubr.f32.mxu0 %v640
        %1287 = vmatmul.mubr.f32.gmra.mrb[0].mxu0 %v639
        %v1288 = vpop.f32.mrb[0].mxu0
        %v1289 = vadd.f32 %v1032, %v1288
        %v1290 = vpop.f32.mrb[0].mxu0
        %v1291 = vadd.f32 %v1034, %v1290
        %1292 = vmatprep.mubr.f32.mxu0 %v644
        %1293 = vmatmul.mubr.f32.gmra.mrb[0].mxu0 %v643
        %v1294 = vpop.f32.mrb[0].mxu0
        %v1295 = vadd.f32 %v1038, %v1294
        %v1296 = vpop.f32.mrb[0].mxu0
        %v1297 = vadd.f32 %v1040, %v1296
        %1298 = vmatprep.mubr.f32.mxu0 %v648
        %1299 = vmatmul.mubr.f32.gmra.mrb[0].mxu0 %v647
        %v1300 = vpop.f32.mrb[0].mxu0
        %v1301 = vadd.f32 %v1044, %v1300
        %v1302 = vpop.f32.mrb[0].mxu0
        %v1303 = vadd.f32 %v1046, %v1302
        %1304 = vmatprep.mubr.f32.mxu0 %v652
        %1305 = vmatmul.mubr.f32.gmra.mrb[0].mxu0 %v651
        %v1306 = vpop.f32.mrb[0].mxu0
        %v1307 = vadd.f32 %v1050, %v1306
        %v1308 = vpop.f32.mrb[0].mxu0
        %v1309 = vadd.f32 %v1052, %v1308
        %1310 = vmatprep.mubr.f32.mxu0 %v656
        %1311 = vmatmul.mubr.f32.gmra.mrb[0].mxu0 %v655
        %v1312 = vpop.f32.mrb[0].mxu0
        %v1313 = vadd.f32 %v1056, %v1312
        %v1314 = vpop.f32.mrb[0].mxu0
        %v1315 = vadd.f32 %v1058, %v1314
        %1316 = vmatprep.mubr.f32.mxu0 %v660
        %1317 = vmatmul.mubr.f32.gmra.mrb[0].mxu0 %v659
        %v1318 = vpop.f32.mrb[0].mxu0
        %v1319 = vadd.f32 %v1062, %v1318
        %v1320 = vpop.f32.mrb[0].mxu0
        %v1321 = vadd.f32 %v1064, %v1320
        %1322 = vmatprep.mubr.f32.mxu0 %v664
        %1323 = vmatmul.mubr.f32.gmra.mrb[0].mxu0 %v663
        %v1324 = vpop.f32.mrb[0].mxu0
        %v1325 = vadd.f32 %v1068, %v1324
        %v1326 = vpop.f32.mrb[0].mxu0
        %v1327 = vadd.f32 %v1070, %v1326
        %1328 = vmatprep.mubr.f32.mxu0 %v668
        %1329 = vmatmul.mubr.f32.gmra.mrb[0].mxu0 %v667
        %v1330 = vpop.f32.mrb[0].mxu0
        %v1331 = vadd.f32 %v1074, %v1330
        %v1332 = vpop.f32.mrb[0].mxu0
        %v1333 = vadd.f32 %v1076, %v1332
        %1334 = vmatprep.mubr.f32.mxu0 %v672
        %1335 = vmatmul.mubr.f32.gmra.mrb[0].mxu0 %v671
        %v1336 = vpop.f32.mrb[0].mxu0
        %v1337 = vadd.f32 %v1080, %v1336
        %v1338 = vpop.f32.mrb[0].mxu0
        %v1339 = vadd.f32 %v1082, %v1338
        %1340 = vmatprep.mubr.f32.mxu0 %v676
        %1341 = vmatmul.mubr.f32.gmra.mrb[0].mxu0 %v675
        %v1342 = vpop.f32.mrb[0].mxu0
        %v1343 = vadd.f32 %v1086, %v1342
        %v1344 = vpop.f32.mrb[0].mxu0
        %v1345 = vadd.f32 %v1088, %v1344
        %1346 = vmatprep.mubr.f32.mxu0 %v680
        %1347 = vmatmul.mubr.f32.gmra.mrb[0].mxu0 %v679
        %v1348 = vpop.f32.mrb[0].mxu0
        %v1349 = vadd.f32 %v1092, %v1348
        %v1350 = vpop.f32.mrb[0].mxu0
        %v1351 = vadd.f32 %v1094, %v1350
        %1352 = vmatprep.mubr.f32.mxu0 %v684
        %1353 = vmatmul.mubr.f32.gmra.mrb[0].mxu0 %v683
        %v1354 = vpop.f32.mrb[0].mxu0
        %v1355 = vadd.f32 %v1098, %v1354
        %v1356 = vpop.f32.mrb[0].mxu0
        %v1357 = vadd.f32 %v1100, %v1356
        %1358 = vmatprep.mubr.f32.mxu0 %v688
        %1359 = vmatmul.mubr.f32.gmra.mrb[0].mxu0 %v687
        %v1360 = vpop.f32.mrb[0].mxu0
        %v1361 = vadd.f32 %v1104, %v1360
        %v1362 = vpop.f32.mrb[0].mxu0
        %v1363 = vadd.f32 %v1106, %v1362
        %1364 = vmatprep.mubr.f32.mxu0 %v692
        %1365 = vmatmul.mubr.f32.gmra.mrb[0].mxu0 %v691
        %v1366 = vpop.f32.mrb[0].mxu0
        %v1367 = vadd.f32 %v1110, %v1366
        %v1368 = vpop.f32.mrb[0].mxu0
        %v1369 = vadd.f32 %v1112, %v1368
        %1370 = vmatprep.mubr.f32.mxu0 %v696
        %1371 = vmatmul.mubr.f32.gmra.mrb[0].mxu0 %v695
        %v1372 = vpop.f32.mrb[0].mxu0
        %v1373 = vadd.f32 %v1116, %v1372
        %v1374 = vpop.f32.mrb[0].mxu0
        %v1375 = vadd.f32 %v1118, %v1374
        %1376 = vmatprep.mubr.f32.mxu0 %v700
        %1377 = vmatmul.mubr.f32.gmra.mrb[0].mxu0 %v699
        %v1378 = vpop.f32.mrb[0].mxu0
        %v1379 = vadd.f32 %v1122, %v1378
        %v1380 = vpop.f32.mrb[0].mxu0
        %v1381 = vadd.f32 %v1124, %v1380
        %1382 = vmatprep.mubr.f32.mxu0 %v704
        %1383 = vmatmul.mubr.f32.gmra.mrb[0].mxu0 %v703
        %v1384 = vpop.f32.mrb[0].mxu0
        %v1385 = vadd.f32 %v1128, %v1384
        %v1386 = vpop.f32.mrb[0].mxu0
        %v1387 = vadd.f32 %v1130, %v1386
        %1388 = vmatprep.mubr.f32.mxu0 %v708
        %1389 = vmatmul.mubr.f32.gmra.mrb[0].mxu0 %v707
        %v1390 = vpop.f32.mrb[0].mxu0
        %v1391 = vadd.f32 %v1134, %v1390
        %v1392 = vpop.f32.mrb[0].mxu0
        %v1393 = vadd.f32 %v1136, %v1392
        %1394 = vmatprep.mubr.f32.mxu0 %v712
        %1395 = vmatmul.mubr.f32.gmra.mrb[0].mxu0 %v711
        %v1396 = vpop.f32.mrb[0].mxu0
        %v1397 = vadd.f32 %v1140, %v1396
        %v1398 = vpop.f32.mrb[0].mxu0
        %v1399 = vadd.f32 %v1142, %v1398
        %1400 = vmatprep.mubr.f32.mxu0 %v716
        %1401 = vmatmul.mubr.f32.gmra.mrb[0].mxu0 %v715
        %v1402 = vpop.f32.mrb[0].mxu0
        %v1403 = vadd.f32 %v1146, %v1402
        %v1404 = vpop.f32.mrb[0].mxu0
        %v1405 = vadd.f32 %v1148, %v1404
        %1406 = vmatprep.mubr.f32.mxu0 %v720
        %1407 = vmatmul.mubr.f32.gmra.mrb[0].mxu0 %v719
        %v1408 = vpop.f32.mrb[0].mxu0
        %v1409 = vadd.f32 %v1152, %v1408
        %v1410 = vpop.f32.mrb[0].mxu0
        %v1411 = vadd.f32 %v1154, %v1410
        %1412 = vmatprep.mubr.f32.mxu0 %v724
        %1413 = vmatmul.mubr.f32.gmra.mrb[0].mxu0 %v723
        %v1414 = vpop.f32.mrb[0].mxu0
        %v1415 = vadd.f32 %v1158, %v1414
        %v1416 = vpop.f32.mrb[0].mxu0
        %v1417 = vadd.f32 %v1160, %v1416
        %1418 = vmatprep.mubr.f32.mxu0 %v728
        %1419 = vmatmul.mubr.f32.gmra.mrb[0].mxu0 %v727
        %v1420 = vpop.f32.mrb[0].mxu0
        %v1421 = vadd.f32 %v1164, %v1420
        %v1422 = vpop.f32.mrb[0].mxu0
        %v1423 = vadd.f32 %v1166, %v1422
        %1424 = vmatprep.mubr.f32.mxu0 %v732
        %1425 = vmatmul.mubr.f32.gmra.mrb[0].mxu0 %v731
        %v1426 = vpop.f32.mrb[0].mxu0
        %v1427 = vadd.f32 %v1170, %v1426
        %v1428 = vpop.f32.mrb[0].mxu0
        %v1429 = vadd.f32 %v1172, %v1428
        %1430 = vmatprep.mubr.f32.mxu0 %v736
        %1431 = vmatmul.mubr.f32.gmra.mrb[0].mxu0 %v735
        %v1432 = vpop.f32.mrb[0].mxu0
        %v1433 = vadd.f32 %v1176, %v1432
        %v1434 = vpop.f32.mrb[0].mxu0
        %v1435 = vadd.f32 %v1178, %v1434
        %1436 = vmatprep.mubr.f32.mxu0 %v740
        %1437 = vmatmul.mubr.f32.gmra.mrb[0].mxu0 %v739
        %v1438 = vpop.f32.mrb[0].mxu0
        %v1439 = vadd.f32 %v1182, %v1438
        %v1440 = vpop.f32.mrb[0].mxu0
        %v1441 = vadd.f32 %v1184, %v1440
        %1442 = vmatprep.mubr.f32.mxu0 %v744
        %1443 = vmatmul.mubr.f32.gmra.mrb[0].mxu0 %v743
        %v1444 = vpop.f32.mrb[0].mxu0
        %v1445 = vadd.f32 %v1188, %v1444
        %v1446 = vpop.f32.mrb[0].mxu0
        %v1447 = vadd.f32 %v1190, %v1446
        %1448 = vmatprep.mubr.f32.mxu0 %v748
        %1449 = vmatmul.mubr.f32.gmra.mrb[0].mxu0 %v747
        %v1450 = vpop.f32.mrb[0].mxu0
        %v1451 = vadd.f32 %v1194, %v1450
        %v1452 = vpop.f32.mrb[0].mxu0
        %v1453 = vadd.f32 %v1196, %v1452
        %1454 = vdwg.mxu0
        %v1455 = vadd.f32 %v877, %v1265
        %v1456 = vadd.f32 %v878, %v1267
        %v1457 = vadd.f32 %v879, %v1271
        %v1458 = vadd.f32 %v880, %v1273
        %v1459 = vadd.f32 %v881, %v1277
        %v1460 = vadd.f32 %v882, %v1279
        %v1461 = vadd.f32 %v883, %v1283
        %v1462 = vadd.f32 %v884, %v1285
        %v1463 = vadd.f32 %v885, %v1289
        %v1464 = vadd.f32 %v886, %v1291
        %v1465 = vadd.f32 %v887, %v1295
        %v1466 = vadd.f32 %v888, %v1297
        %v1467 = vadd.f32 %v889, %v1301
        %v1468 = vadd.f32 %v890, %v1303
        %v1469 = vadd.f32 %v891, %v1307
        %v1470 = vadd.f32 %v892, %v1309
        %v1471 = vadd.f32 %v893, %v1313
        %v1472 = vadd.f32 %v894, %v1315
        %v1473 = vadd.f32 %v895, %v1319
        %v1474 = vadd.f32 %v896, %v1321
        %v1475 = vadd.f32 %v897, %v1325
        %v1476 = vadd.f32 %v898, %v1327
        %v1477 = vadd.f32 %v899, %v1331
        %v1478 = vadd.f32 %v900, %v1333
        %v1479 = vadd.f32 %v901, %v1337
        %v1480 = vadd.f32 %v902, %v1339
        %v1481 = vadd.f32 %v903, %v1343
        %v1482 = vadd.f32 %v904, %v1345
        %v1483 = vadd.f32 %v905, %v1349
        %v1484 = vadd.f32 %v906, %v1351
        %v1485 = vadd.f32 %v907, %v1355
        %v1486 = vadd.f32 %v908, %v1357
        %v1487 = vadd.f32 %v909, %v1361
        %v1488 = vadd.f32 %v910, %v1363
        %v1489 = vadd.f32 %v911, %v1367
        %v1490 = vadd.f32 %v912, %v1369
        %v1491 = vadd.f32 %v913, %v1373
        %v1492 = vadd.f32 %v914, %v1375
        %v1493 = vadd.f32 %v915, %v1379
        %v1494 = vadd.f32 %v916, %v1381
        %v1495 = vadd.f32 %v917, %v1385
        %v1496 = vadd.f32 %v918, %v1387
        %v1497 = vadd.f32 %v919, %v1391
        %v1498 = vadd.f32 %v920, %v1393
        %v1499 = vadd.f32 %v921, %v1397
        %v1500 = vadd.f32 %v922, %v1399
        %v1501 = vadd.f32 %v923, %v1403
        %v1502 = vadd.f32 %v924, %v1405
        %v1503 = vadd.f32 %v925, %v1409
        %v1504 = vadd.f32 %v926, %v1411
        %v1505 = vadd.f32 %v927, %v1415
        %v1506 = vadd.f32 %v928, %v1417
        %v1507 = vadd.f32 %v929, %v1421
        %v1508 = vadd.f32 %v930, %v1423
        %v1509 = vadd.f32 %v931, %v1427
        %v1510 = vadd.f32 %v932, %v1429
        %v1511 = vadd.f32 %v933, %v1433
        %v1512 = vadd.f32 %v934, %v1435
        %v1513 = vadd.f32 %v935, %v1439
        %v1514 = vadd.f32 %v936, %v1441
        %v1515 = vadd.f32 %v937, %v1445
        %v1516 = vadd.f32 %v938, %v1447
        %v1517 = vadd.f32 %v939, %v1451
        %v1518 = vadd.f32 %v940, %v1453
        %1519 = vst [vmem:[#allocation2] sm:$0xff] %v1455
        %1520 = vst [vmem:[#allocation2 + $0x8] sm:$0xff] %v1456
        %1521 = vst [vmem:[#allocation2 + $0x10] sm:$0xff] %v1457
        %1522 = vst [vmem:[#allocation2 + $0x18] sm:$0xff] %v1458
        %1523 = vst [vmem:[#allocation2 + $0x20] sm:$0xff] %v1459
        %1524 = vst [vmem:[#allocation2 + $0x28] sm:$0xff] %v1460
        %1525 = vst [vmem:[#allocation2 + $0x30] sm:$0xff] %v1461
        %1526 = vst [vmem:[#allocation2 + $0x38] sm:$0xff] %v1462
        %1527 = vst [vmem:[#allocation2 + $0x40] sm:$0xff] %v1463
        %1528 = vst [vmem:[#allocation2 + $0x48] sm:$0xff] %v1464
        %1529 = vst [vmem:[#allocation2 + $0x50] sm:$0xff] %v1465
        %1530 = vst [vmem:[#allocation2 + $0x58] sm:$0xff] %v1466
        %1531 = vst [vmem:[#allocation2 + $0x60] sm:$0xff] %v1467
        %1532 = vst [vmem:[#allocation2 + $0x68] sm:$0xff] %v1468
        %1533 = vst [vmem:[#allocation2 + $0x70] sm:$0xff] %v1469
        %1534 = vst [vmem:[#allocation2 + $0x78] sm:$0xff] %v1470
        %1535 = vst [vmem:[#allocation2 + $0x80] sm:$0xff] %v1471
        %1536 = vst [vmem:[#allocation2 + $0x88] sm:$0xff] %v1472
        %1537 = vst [vmem:[#allocation2 + $0x90] sm:$0xff] %v1473
        %1538 = vst [vmem:[#allocation2 + $0x98] sm:$0xff] %v1474
        %1539 = vst [vmem:[#allocation2 + $0xa0] sm:$0xff] %v1475
        %1540 = vst [vmem:[#allocation2 + $0xa8] sm:$0xff] %v1476
        %1541 = vst [vmem:[#allocation2 + $0xb0] sm:$0xff] %v1477
        %1542 = vst [vmem:[#allocation2 + $0xb8] sm:$0xff] %v1478
        %1543 = vst [vmem:[#allocation2 + $0xc0] sm:$0xff] %v1479
        %1544 = vst [vmem:[#allocation2 + $0xc8] sm:$0xff] %v1480
        %1545 = vst [vmem:[#allocation2 + $0xd0] sm:$0xff] %v1481
        %1546 = vst [vmem:[#allocation2 + $0xd8] sm:$0xff] %v1482
        %1547 = vst [vmem:[#allocation2 + $0xe0] sm:$0xff] %v1483
        %1548 = vst [vmem:[#allocation2 + $0xe8] sm:$0xff] %v1484
        %1549 = vst [vmem:[#allocation2 + $0xf0] sm:$0xff] %v1485
        %1550 = vst [vmem:[#allocation2 + $0xf8] sm:$0xff] %v1486
        %1551 = vst [vmem:[#allocation2 + $0x100] sm:$0xff] %v1487
        %1552 = vst [vmem:[#allocation2 + $0x108] sm:$0xff] %v1488
        %1553 = vst [vmem:[#allocation2 + $0x110] sm:$0xff] %v1489
        %1554 = vst [vmem:[#allocation2 + $0x118] sm:$0xff] %v1490
        %1555 = vst [vmem:[#allocation2 + $0x120] sm:$0xff] %v1491
        %1556 = vst [vmem:[#allocation2 + $0x128] sm:$0xff] %v1492
        %1557 = vst [vmem:[#allocation2 + $0x130] sm:$0xff] %v1493
        %1558 = vst [vmem:[#allocation2 + $0x138] sm:$0xff] %v1494
        %1559 = vst [vmem:[#allocation2 + $0x140] sm:$0xff] %v1495
        %1560 = vst [vmem:[#allocation2 + $0x148] sm:$0xff] %v1496
        %1561 = vst [vmem:[#allocation2 + $0x150] sm:$0xff] %v1497
        %1562 = vst [vmem:[#allocation2 + $0x158] sm:$0xff] %v1498
        %1563 = vst [vmem:[#allocation2 + $0x160] sm:$0xff] %v1499
        %1564 = vst [vmem:[#allocation2 + $0x168] sm:$0xff] %v1500
        %1565 = vst [vmem:[#allocation2 + $0x170] sm:$0xff] %v1501
        %1566 = vst [vmem:[#allocation2 + $0x178] sm:$0xff] %v1502
        %1567 = vst [vmem:[#allocation2 + $0x180] sm:$0xff] %v1503
        %1568 = vst [vmem:[#allocation2 + $0x188] sm:$0xff] %v1504
        %1569 = vst [vmem:[#allocation2 + $0x190] sm:$0xff] %v1505
        %1570 = vst [vmem:[#allocation2 + $0x198] sm:$0xff] %v1506
        %1571 = vst [vmem:[#allocation2 + $0x1a0] sm:$0xff] %v1507
        %1572 = vst [vmem:[#allocation2 + $0x1a8] sm:$0xff] %v1508
        %1573 = vst [vmem:[#allocation2 + $0x1b0] sm:$0xff] %v1509
        %1574 = vst [vmem:[#allocation2 + $0x1b8] sm:$0xff] %v1510
        %1575 = vst [vmem:[#allocation2 + $0x1c0] sm:$0xff] %v1511
        %1576 = vst [vmem:[#allocation2 + $0x1c8] sm:$0xff] %v1512
        %1577 = vst [vmem:[#allocation2 + $0x1d0] sm:$0xff] %v1513
        %1578 = vst [vmem:[#allocation2 + $0x1d8] sm:$0xff] %v1514
        %1579 = vst [vmem:[#allocation2 + $0x1e0] sm:$0xff] %v1515
        %1580 = vst [vmem:[#allocation2 + $0x1e8] sm:$0xff] %v1516
        %1581 = vst [vmem:[#allocation2 + $0x1f0] sm:$0xff] %v1517
        %1582 = vst [vmem:[#allocation2 + $0x1f8] sm:$0xff] %v1518
        // Predicated region
        $region53: #{tpu_custom_call.1} parent=35 // pred_check
          %p1583 = pneg %p344
        $region54: #{tpu_custom_call.1} parent=35 // pred_check_branch
          %1585 = sbr.rel (%p1583) target = $region56
        $region55: #{tpu_custom_call.1} parent=35 // pred_region
          %v1586 = vld [vmem:[#allocation2] sm:$0xff]
          %v1587 = vld [vmem:[#allocation2 + $0x8] sm:$0xff]
          %v1588 = vld [vmem:[#allocation2 + $0x10] sm:$0xff]
          %v1589 = vld [vmem:[#allocation2 + $0x18] sm:$0xff]
          %v1590 = vld [vmem:[#allocation2 + $0x20] sm:$0xff]
          %v1591 = vld [vmem:[#allocation2 + $0x28] sm:$0xff]
          %v1592 = vld [vmem:[#allocation2 + $0x30] sm:$0xff]
          %v1593 = vld [vmem:[#allocation2 + $0x38] sm:$0xff]
          %v1594 = vld [vmem:[#allocation2 + $0x40] sm:$0xff]
          %v1595 = vld [vmem:[#allocation2 + $0x48] sm:$0xff]
          %v1596 = vld [vmem:[#allocation2 + $0x50] sm:$0xff]
          %v1597 = vld [vmem:[#allocation2 + $0x58] sm:$0xff]
          %v1598 = vld [vmem:[#allocation2 + $0x60] sm:$0xff]
          %v1599 = vld [vmem:[#allocation2 + $0x68] sm:$0xff]
          %v1600 = vld [vmem:[#allocation2 + $0x70] sm:$0xff]
          %v1601 = vld [vmem:[#allocation2 + $0x78] sm:$0xff]
          %v1602 = vld [vmem:[#allocation2 + $0x80] sm:$0xff]
          %v1603 = vld [vmem:[#allocation2 + $0x88] sm:$0xff]
          %v1604 = vld [vmem:[#allocation2 + $0x90] sm:$0xff]
          %v1605 = vld [vmem:[#allocation2 + $0x98] sm:$0xff]
          %v1606 = vld [vmem:[#allocation2 + $0xa0] sm:$0xff]
          %v1607 = vld [vmem:[#allocation2 + $0xa8] sm:$0xff]
          %v1608 = vld [vmem:[#allocation2 + $0xb0] sm:$0xff]
          %v1609 = vld [vmem:[#allocation2 + $0xb8] sm:$0xff]
          %v1610 = vld [vmem:[#allocation2 + $0xc0] sm:$0xff]
          %v1611 = vld [vmem:[#allocation2 + $0xc8] sm:$0xff]
          %v1612 = vld [vmem:[#allocation2 + $0xd0] sm:$0xff]
          %v1613 = vld [vmem:[#allocation2 + $0xd8] sm:$0xff]
          %v1614 = vld [vmem:[#allocation2 + $0xe0] sm:$0xff]
          %v1615 = vld [vmem:[#allocation2 + $0xe8] sm:$0xff]
          %v1616 = vld [vmem:[#allocation2 + $0xf0] sm:$0xff]
          %v1617 = vld [vmem:[#allocation2 + $0xf8] sm:$0xff]
          %v1618 = vld [vmem:[#allocation2 + $0x100] sm:$0xff]
          %v1619 = vld [vmem:[#allocation2 + $0x108] sm:$0xff]
          %v1620 = vld [vmem:[#allocation2 + $0x110] sm:$0xff]
          %v1621 = vld [vmem:[#allocation2 + $0x118] sm:$0xff]
          %v1622 = vld [vmem:[#allocation2 + $0x120] sm:$0xff]
          %v1623 = vld [vmem:[#allocation2 + $0x128] sm:$0xff]
          %v1624 = vld [vmem:[#allocation2 + $0x130] sm:$0xff]
          %v1625 = vld [vmem:[#allocation2 + $0x138] sm:$0xff]
          %v1626 = vld [vmem:[#allocation2 + $0x140] sm:$0xff]
          %v1627 = vld [vmem:[#allocation2 + $0x148] sm:$0xff]
          %v1628 = vld [vmem:[#allocation2 + $0x150] sm:$0xff]
          %v1629 = vld [vmem:[#allocation2 + $0x158] sm:$0xff]
          %v1630 = vld [vmem:[#allocation2 + $0x160] sm:$0xff]
          %v1631 = vld [vmem:[#allocation2 + $0x168] sm:$0xff]
          %v1632 = vld [vmem:[#allocation2 + $0x170] sm:$0xff]
          %v1633 = vld [vmem:[#allocation2 + $0x178] sm:$0xff]
          %v1634 = vld [vmem:[#allocation2 + $0x180] sm:$0xff]
          %v1635 = vld [vmem:[#allocation2 + $0x188] sm:$0xff]
          %v1636 = vld [vmem:[#allocation2 + $0x190] sm:$0xff]
          %v1637 = vld [vmem:[#allocation2 + $0x198] sm:$0xff]
          %v1638 = vld [vmem:[#allocation2 + $0x1a0] sm:$0xff]
          %v1639 = vld [vmem:[#allocation2 + $0x1a8] sm:$0xff]
          %v1640 = vld [vmem:[#allocation2 + $0x1b0] sm:$0xff]
          %v1641 = vld [vmem:[#allocation2 + $0x1b8] sm:$0xff]
          %v1642 = vld [vmem:[#allocation2 + $0x1c0] sm:$0xff]
          %v1643 = vld [vmem:[#allocation2 + $0x1c8] sm:$0xff]
          %v1644 = vld [vmem:[#allocation2 + $0x1d0] sm:$0xff]
          %v1645 = vld [vmem:[#allocation2 + $0x1d8] sm:$0xff]
          %v1646 = vld [vmem:[#allocation2 + $0x1e0] sm:$0xff]
          %v1647 = vld [vmem:[#allocation2 + $0x1e8] sm:$0xff]
          %v1648 = vld [vmem:[#allocation2 + $0x1f0] sm:$0xff]
          %v1649 = vld [vmem:[#allocation2 + $0x1f8] sm:$0xff]
          %1650 = vst [vmem:[%s330] sm:$0xff] %v1586
          %1651 = vst [vmem:[%s330 + $0x8] sm:$0xff] %v1587
          %1652 = vst [vmem:[%s330 + $0x10] sm:$0xff] %v1588
          %1653 = vst [vmem:[%s330 + $0x18] sm:$0xff] %v1589
          %1654 = vst [vmem:[%s330 + $0x20] sm:$0xff] %v1590
          %1655 = vst [vmem:[%s330 + $0x28] sm:$0xff] %v1591
          %1656 = vst [vmem:[%s330 + $0x30] sm:$0xff] %v1592
          %1657 = vst [vmem:[%s330 + $0x38] sm:$0xff] %v1593
          %1658 = vst [vmem:[%s330 + $0x40] sm:$0xff] %v1594
          %1659 = vst [vmem:[%s330 + $0x48] sm:$0xff] %v1595
          %1660 = vst [vmem:[%s330 + $0x50] sm:$0xff] %v1596
          %1661 = vst [vmem:[%s330 + $0x58] sm:$0xff] %v1597
          %1662 = vst [vmem:[%s330 + $0x60] sm:$0xff] %v1598
          %1663 = vst [vmem:[%s330 + $0x68] sm:$0xff] %v1599
          %1664 = vst [vmem:[%s330 + $0x70] sm:$0xff] %v1600
          %1665 = vst [vmem:[%s330 + $0x78] sm:$0xff] %v1601
          %1666 = vst [vmem:[%s330 + $0x80] sm:$0xff] %v1602
          %1667 = vst [vmem:[%s330 + $0x88] sm:$0xff] %v1603
          %1668 = vst [vmem:[%s330 + $0x90] sm:$0xff] %v1604
          %1669 = vst [vmem:[%s330 + $0x98] sm:$0xff] %v1605
          %1670 = vst [vmem:[%s330 + $0xa0] sm:$0xff] %v1606
          %1671 = vst [vmem:[%s330 + $0xa8] sm:$0xff] %v1607
          %1672 = vst [vmem:[%s330 + $0xb0] sm:$0xff] %v1608
          %1673 = vst [vmem:[%s330 + $0xb8] sm:$0xff] %v1609
          %1674 = vst [vmem:[%s330 + $0xc0] sm:$0xff] %v1610
          %1675 = vst [vmem:[%s330 + $0xc8] sm:$0xff] %v1611
          %1676 = vst [vmem:[%s330 + $0xd0] sm:$0xff] %v1612
          %1677 = vst [vmem:[%s330 + $0xd8] sm:$0xff] %v1613
          %1678 = vst [vmem:[%s330 + $0xe0] sm:$0xff] %v1614
          %1679 = vst [vmem:[%s330 + $0xe8] sm:$0xff] %v1615
          %1680 = vst [vmem:[%s330 + $0xf0] sm:$0xff] %v1616
          %1681 = vst [vmem:[%s330 + $0xf8] sm:$0xff] %v1617
          %1682 = vst [vmem:[%s330 + $0x100] sm:$0xff] %v1618
          %1683 = vst [vmem:[%s330 + $0x108] sm:$0xff] %v1619
          %1684 = vst [vmem:[%s330 + $0x110] sm:$0xff] %v1620
          %1685 = vst [vmem:[%s330 + $0x118] sm:$0xff] %v1621
          %1686 = vst [vmem:[%s330 + $0x120] sm:$0xff] %v1622
          %1687 = vst [vmem:[%s330 + $0x128] sm:$0xff] %v1623
          %1688 = vst [vmem:[%s330 + $0x130] sm:$0xff] %v1624
          %1689 = vst [vmem:[%s330 + $0x138] sm:$0xff] %v1625
          %1690 = vst [vmem:[%s330 + $0x140] sm:$0xff] %v1626
          %1691 = vst [vmem:[%s330 + $0x148] sm:$0xff] %v1627
          %1692 = vst [vmem:[%s330 + $0x150] sm:$0xff] %v1628
          %1693 = vst [vmem:[%s330 + $0x158] sm:$0xff] %v1629
          %1694 = vst [vmem:[%s330 + $0x160] sm:$0xff] %v1630
          %1695 = vst [vmem:[%s330 + $0x168] sm:$0xff] %v1631
          %1696 = vst [vmem:[%s330 + $0x170] sm:$0xff] %v1632
          %1697 = vst [vmem:[%s330 + $0x178] sm:$0xff] %v1633
          %1698 = vst [vmem:[%s330 + $0x180] sm:$0xff] %v1634
          %1699 = vst [vmem:[%s330 + $0x188] sm:$0xff] %v1635
          %1700 = vst [vmem:[%s330 + $0x190] sm:$0xff] %v1636
          %1701 = vst [vmem:[%s330 + $0x198] sm:$0xff] %v1637
          %1702 = vst [vmem:[%s330 + $0x1a0] sm:$0xff] %v1638
          %1703 = vst [vmem:[%s330 + $0x1a8] sm:$0xff] %v1639
          %1704 = vst [vmem:[%s330 + $0x1b0] sm:$0xff] %v1640
          %1705 = vst [vmem:[%s330 + $0x1b8] sm:$0xff] %v1641
          %1706 = vst [vmem:[%s330 + $0x1c0] sm:$0xff] %v1642
          %1707 = vst [vmem:[%s330 + $0x1c8] sm:$0xff] %v1643
          %1708 = vst [vmem:[%s330 + $0x1d0] sm:$0xff] %v1644
          %1709 = vst [vmem:[%s330 + $0x1d8] sm:$0xff] %v1645
          %1710 = vst [vmem:[%s330 + $0x1e0] sm:$0xff] %v1646
          %1711 = vst [vmem:[%s330 + $0x1e8] sm:$0xff] %v1647
          %1712 = vst [vmem:[%s330 + $0x1f0] sm:$0xff] %v1648
          %1713 = vst [vmem:[%s330 + $0x1f8] sm:$0xff] %v1649
        $region56: #{tpu_custom_call.1} parent=35 // pred_fallthru
          _
        %s1714 = sand.u32 %s166, 1
        %s1715 = scalar_lea.sflag [#allocation7], %s1714
        %s1716 = sand.u32 %s166, 1
        %s1717 = smul.addr %s1716, 512
        %s1718 = scalar_lea.vmem [#allocation11], %s1717
        // Predicated region
        $region57: #{tpu_custom_call.1} parent=35 // pred_check
          %p1719 = pneg %p176
        $region58: #{tpu_custom_call.1} parent=35 // pred_check_branch
          %1721 = sbr.rel (%p1719) target = $region60
        $region59: #{tpu_custom_call.1} parent=35 // pred_region
          %s1722 = smul.u32 32, %s32
          %s1723 = smul.u32 2, %s33
          %s1725 = ssub.s32 8192, 8192
          %1726 = vsyncadd %s1715, %s1725
          %s1727 = smul.addr %s1722, 4
          %s1728 = sadd.s32 %s1723, %s1727
          %s1729 = smul.addr %s1728, 128
          %s1730 = scalar_lea.hbm %s5, %s1729
          %s1731 = sshll.u32 %s1718, 4
          %s1732 = int_to_ptr.vmem [resolvable:$true] %s1731
          %1737 = dma.vmem_to_hbm [thread:$0]  %s1732, 8192, %s1730, %s1715, 256, 512, 16
        $region60: #{tpu_custom_call.1} parent=35 // pred_fallthru
          _
      $region36: #{tpu_custom_call.1} parent=5 // pred_fallthru
        _
      %p1738 = scmp.le.s32.totalorder 2, %s22
      // Predicated region
      $region61: #{tpu_custom_call.1} parent=5 // pred_check
        %p1739 = pneg %p1738
      $region62: #{tpu_custom_call.1} parent=5 // pred_check_branch
        %1741 = sbr.rel (%p1739) target = $region64
      $region63: #{tpu_custom_call.1} parent=5 // pred_region
        %s1742 = ssub.s32 %s22, 2
        // Predicated region
        $region65: #{tpu_custom_call.1} parent=63 // pred_check
          %p1743 = pneg %p182
        $region66: #{tpu_custom_call.1} parent=63 // pred_check_branch
          %1745 = sbr.rel (%p1743) target = $region68
        $region67: #{tpu_custom_call.1} parent=63 // pred_region
          %s1746 = sand.u32 %s167, 1
          %s1747 = scalar_lea.sflag [#allocation7], %s1746
          %s1748 = sand.u32 %s167, 1
          %s1749 = smul.addr %s1748, 512
          %s1750 = scalar_lea.vmem [#allocation11], %s1749
          %1751 = dma.done %s1747, 8192
        $region68: #{tpu_custom_call.1} parent=63 // pred_fallthru
          _
      $region64: #{tpu_custom_call.1} parent=5 // pred_fallthru
        _
    $region6: #{tpu_custom_call.1} parent=1 // loop_footer
      %s26 = sadd.s32 1, %s22
    $region7: #{tpu_custom_call.1} parent=1 // loop_footer_branch
      %21 = sbr.rel target = $region3
    $region8: #{tpu_custom_call.1} parent=1 // loop_exit
      _
    %1752 = vsyncpa [#allocation6], 1
    %s1753 = scalar_lea.sflag [#allocation6], 1
    %1754 = vsyncpa %s1753, 1
    %1755 = vsyncpa [#allocation9], 1
    %s1756 = scalar_lea.sflag [#allocation9], 1
    %1757 = vsyncpa %s1756, 1
    %1758 = vsyncpa [#allocation7], 1
    %s1759 = scalar_lea.sflag [#allocation7], 1
    %1760 = vsyncpa %s1759, 1

</llo_original>
